<compile_context>
chip_gen: v7x
topology: tpu7x:2x2x1
jax: 0.10.0
libtpu: 0.0.40
codegen_flags: <defaults>
</compile_context>

<pallas_src>
import functools

import jax
import jax.numpy as jnp
from jax import lax
from jax.experimental import pallas as pl
from jax.experimental.pallas import tpu as pltpu

EMB_DIM = 128
HID_DIM = 256
LEAKY_SLOPE = 0.01  # PyTorch nn.LeakyReLU default
LANE = 128
NEG_BIG = -1e30     # bias for padded (fake) classes -> exp() underflows to 0


def _leaky_relu(x):
    return jnp.where(x > 0, x, LEAKY_SLOPE * x)


def _conv1d_k3_fused(x, is_first, is_last, w_ref, b_ref):
    """x: (M, Cin) f32 rows (flattened batch*seq).  w_ref: (3*Cin, Cout) bf16.

    Equivalent to nn.Conv1d(Cin, Cout, kernel_size=3, padding=1) applied
    independently per sequence.  is_first / is_last zero the shifted terms at
    sequence boundaries so the flattened-row roll never leaks across sequences
    (tile boundaries always coincide with sequence boundaries).
    """
    M = x.shape[0]
    x_m1 = jnp.where(is_first, 0.0, pltpu.roll(x, shift=1, axis=0))      # x[t-1]
    x_p1 = jnp.where(is_last, 0.0, pltpu.roll(x, shift=M - 1, axis=0))   # x[t+1]
    xcat = jnp.concatenate([x_m1, x, x_p1], axis=-1).astype(jnp.bfloat16)  # (M, 3*Cin)
    return jnp.dot(xcat, w_ref[...], preferred_element_type=jnp.float32) + b_ref[...]


def _cnn_kernel(tok_ref, emb_ref, w1_ref, b1_ref, w2_ref, b2_ref,
                w3_ref, b3_ref, wl_ref, bl_ref, out_ref, *, seq_len):
    M, nc_pad = out_ref.shape
    L = seq_len

    # Row-index boundary masks, built once and reused by all three conv layers.
    row = lax.broadcasted_iota(jnp.int32, (M, 1), 0)
    pos = row % L
    is_first = pos == 0
    is_last = pos == (L - 1)

    # Embedding gather as a one-hot matmul on the MXU (table lives in VMEM).
    col = lax.broadcasted_iota(jnp.int32, (M, nc_pad), 1)
    onehot = (tok_ref[...] == col).astype(jnp.bfloat16)                      # (M, nc_pad)
    x = jnp.dot(onehot, emb_ref[...], preferred_element_type=jnp.float32)    # (M, 128)

    h = _leaky_relu(_conv1d_k3_fused(x, is_first, is_last, w1_ref, b1_ref))  # (M, 256)
    h = _leaky_relu(_conv1d_k3_fused(h, is_first, is_last, w2_ref, b2_ref))  # (M, 256)
    h = _leaky_relu(_conv1d_k3_fused(h, is_first, is_last, w3_ref, b3_ref))  # (M, 256)

    logits = (jnp.dot(h.astype(jnp.bfloat16), wl_ref[...],
                      preferred_element_type=jnp.float32) + bl_ref[...])     # (M, nc_pad)

    # Softmax over the (lane-dense, padded) class dimension.
    m = jnp.max(logits, axis=-1, keepdims=True)
    e = jnp.exp(logits - m)                       # padded cols -> exp(-1e30) == 0
    inv = pl.reciprocal(jnp.sum(e, axis=-1, keepdims=True), approx=True)
    out_ref[...] = (e * inv).astype(out_ref.dtype)


def _round_up(x, m):
    return (x + m - 1) // m * m


def _choose_batch_tile(B, L, max_rows=1024):
    """Batches per grid step; tile boundaries must align with sequence starts."""
    if B * L <= max_rows:
        return B                       # whole batch in one kernel invocation
    for d in range(B, 0, -1):
        if B % d == 0 and d * L <= max_rows and (d * L) % 8 == 0:
            return d
    return B


@jax.jit
def cnn_forward(tokens, params):
    """tokens: int32 (B, L) -> probs float32 (B, L, n_classes)."""
    B, L = tokens.shape
    n_classes = params["wl"].shape[1]
    nc_pad = _round_up(max(n_classes, LANE), LANE)

    # ---- operand prep (weight-sized, negligible) ---------------------------
    emb_p = jnp.zeros((nc_pad, EMB_DIM), jnp.bfloat16)
    emb_p = emb_p.at[:n_classes].set(params["emb"].astype(jnp.bfloat16))

    def fuse_w(w):  # (3, Cin, Cout) -> (3*Cin, Cout) bf16, taps stacked along K
        return w.astype(jnp.bfloat16).reshape(-1, w.shape[-1])

    w1, w2, w3 = fuse_w(params["w1"]), fuse_w(params["w2"]), fuse_w(params["w3"])
    b1, b2, b3 = params["b1"], params["b2"], params["b3"]

    wl_p = jnp.zeros((HID_DIM, nc_pad), jnp.bfloat16)
    wl_p = wl_p.at[:, :n_classes].set(params["wl"].astype(jnp.bfloat16))
    bl_p = jnp.full((1, nc_pad), NEG_BIG, jnp.float32)
    bl_p = bl_p.at[:, :n_classes].set(params["bl"])

    tok_flat = tokens.reshape(B * L, 1).astype(jnp.int32)

    TB = _choose_batch_tile(B, L)
    TM = TB * L
    grid = (B // TB,)

    full = lambda shape: pl.BlockSpec(shape, lambda i: (0,) * len(shape))

    out = pl.pallas_call(
        functools.partial(_cnn_kernel, seq_len=L),
        out_shape=jax.ShapeDtypeStruct((B * L, nc_pad), jnp.float32),
        grid=grid,
        in_specs=[
            pl.BlockSpec((TM, 1), lambda i: (i, 0)),           # tokens
            full((nc_pad, EMB_DIM)),                           # embedding table
            full((3 * EMB_DIM, HID_DIM)), full((1, HID_DIM)),  # conv1
            full((3 * HID_DIM, HID_DIM)), full((1, HID_DIM)),  # conv2
            full((3 * HID_DIM, HID_DIM)), full((1, HID_DIM)),  # conv3
            full((HID_DIM, nc_pad)), full((1, nc_pad)),        # linear (padded)
        ],
        out_specs=pl.BlockSpec((TM, nc_pad), lambda i: (i, 0)),
        compiler_params=pltpu.CompilerParams(
            dimension_semantics=("parallel",)),
    )(tok_flat, emb_p, w1, b1, w2, b2, w3, b3, wl_p, bl_p)

    return out[:, :n_classes].reshape(B, L, n_classes)


def init_params(key, n_classes):
    """Deterministic synthetic parameters matching CNNModel.__init__ shapes.

    Conv weights stored as (3, Cin, Cout) = permuted PyTorch (Cout, Cin, 3);
    linear weight as (256, n_classes) = transposed PyTorch (n_classes, 256).
    """
    ks = jax.random.split(key, 9)
    scale = 0.05
    emb = scale * jax.random.normal(ks[0], (n_classes, EMB_DIM), jnp.float32)
    emb = emb.at[0].set(0.0)  # padding_idx=0
    return {
        "emb": emb,
        "w1": scale * jax.random.normal(ks[1], (3, EMB_DIM, HID_DIM), jnp.float32),
        "b1": scale * jax.random.normal(ks[2], (1, HID_DIM), jnp.float32),
        "w2": scale * jax.random.normal(ks[3], (3, HID_DIM, HID_DIM), jnp.float32),
        "b2": scale * jax.random.normal(ks[4], (1, HID_DIM), jnp.float32),
        "w3": scale * jax.random.normal(ks[5], (3, HID_DIM, HID_DIM), jnp.float32),
        "b3": scale * jax.random.normal(ks[6], (1, HID_DIM), jnp.float32),
        "wl": scale * jax.random.normal(ks[7], (HID_DIM, n_classes), jnp.float32),
        "bl": scale * jax.random.normal(ks[8], (1, n_classes), jnp.float32),
    }


def _reference_forward(tokens, params):
    """Pure-JAX f32 reference mirroring the PyTorch module."""
    x = jnp.take(params["emb"], tokens, axis=0)          # (B, L, 128)

    def conv(x, w, b):  # x (B,L,Cin), w (3,Cin,Cout)
        xp = jnp.pad(x, ((0, 0), (1, 1), (0, 0)))
        return xp[:, :-2] @ w[0] + xp[:, 1:-1] @ w[1] + xp[:, 2:] @ w[2] + b

    h = conv(x, params["w1"], params["b1"]); h = jnp.where(h > 0, h, LEAKY_SLOPE * h)
    h = conv(h, params["w2"], params["b2"]); h = jnp.where(h > 0, h, LEAKY_SLOPE * h)
    h = conv(h, params["w3"], params["b3"]); h = jnp.where(h > 0, h, LEAKY_SLOPE * h)
    logits = h @ params["wl"] + params["bl"]
    return jax.nn.softmax(logits, axis=2)


if __name__ == "__main__":
    n_classes = 32   # vocab size == number of output classes in CNNModel
    B, L = 2, 8

    key = jax.random.PRNGKey(0)
    k_tok, k_par = jax.random.split(key)
    tokens = jax.random.randint(k_tok, (B, L), minval=0, maxval=n_classes,
                                dtype=jnp.int32)
    params = init_params(k_par, n_classes)

    out = cnn_forward(tokens, params)
    out = jax.block_until_ready(out)

    ref = _reference_forward(tokens, params)
    assert out.shape == (B, L, n_classes)
    # bf16 matmul inputs + approx reciprocal -> slightly looser tolerances.
    assert jnp.allclose(out, ref, atol=2e-2, rtol=0), float(jnp.max(jnp.abs(out - ref)))
    assert jnp.allclose(jnp.sum(out, axis=-1), 1.0, atol=5e-3)

    print("KERNEL_OK")
</pallas_src>

<mosaic_0001>
module attributes {stable_mosaic.version = 11 : i64} {
  func.func @_cnn_kernel(%arg0: i32, %arg1: memref<16x1xi32, #tpu.memory_space<vmem>>, %arg2: memref<128x128xbf16, #tpu.memory_space<vmem>>, %arg3: memref<384x256xbf16, #tpu.memory_space<vmem>>, %arg4: memref<1x256xf32, #tpu.memory_space<vmem>>, %arg5: memref<768x256xbf16, #tpu.memory_space<vmem>>, %arg6: memref<1x256xf32, #tpu.memory_space<vmem>>, %arg7: memref<768x256xbf16, #tpu.memory_space<vmem>>, %arg8: memref<1x256xf32, #tpu.memory_space<vmem>>, %arg9: memref<256x128xbf16, #tpu.memory_space<vmem>>, %arg10: memref<1x128xf32, #tpu.memory_space<vmem>>, %arg11: memref<16x128xf32, #tpu.memory_space<vmem>>) attributes {dimension_semantics = [#tpu.dimension_semantics<parallel>], iteration_bounds = array<i64: 1>, scalar_prefetch = 0 : i64, scratch_operands = 0 : i64, tpu.core_type = #tpu.core_type<tc>, window_params = [{transform_indices = @transform_0, window_bounds = array<i64: 16, 1>}, {pipeline_mode = #tpu.pipeline_mode<synchronous>, transform_indices = @transform_1, window_bounds = array<i64: 128, 128>}, {pipeline_mode = #tpu.pipeline_mode<synchronous>, transform_indices = @transform_2, window_bounds = array<i64: 384, 256>}, {pipeline_mode = #tpu.pipeline_mode<synchronous>, transform_indices = @transform_3, window_bounds = array<i64: 1, 256>}, {pipeline_mode = #tpu.pipeline_mode<synchronous>, transform_indices = @transform_4, window_bounds = array<i64: 768, 256>}, {pipeline_mode = #tpu.pipeline_mode<synchronous>, transform_indices = @transform_5, window_bounds = array<i64: 1, 256>}, {pipeline_mode = #tpu.pipeline_mode<synchronous>, transform_indices = @transform_6, window_bounds = array<i64: 768, 256>}, {pipeline_mode = #tpu.pipeline_mode<synchronous>, transform_indices = @transform_7, window_bounds = array<i64: 1, 256>}, {pipeline_mode = #tpu.pipeline_mode<synchronous>, transform_indices = @transform_8, window_bounds = array<i64: 256, 128>}, {pipeline_mode = #tpu.pipeline_mode<synchronous>, transform_indices = @transform_9, window_bounds = array<i64: 1, 128>}, {transform_indices = @transform_10, window_bounds = array<i64: 16, 128>}]} {
    %0 = tpu.iota {dimensions = array<i32: 0>} : vector<16x1xi32>
    %c8_i32 = arith.constant 8 : i32
    %c0_i32 = arith.constant 0 : i32
    %1 = arith.cmpi eq, %c8_i32, %c0_i32 : i32
    %c1_i32 = arith.constant 1 : i32
    %2 = arith.select %1, %c1_i32, %c8_i32 : i32
    %3 = vector.broadcast %2 : i32 to vector<16x1xi32>
    %4 = arith.remsi %0, %3 : vector<16x1xi32>
    %c0_i32_0 = arith.constant 0 : i32
    %5 = vector.broadcast %c0_i32_0 : i32 to vector<16x1xi32>
    %6 = arith.cmpi ne, %4, %5 : vector<16x1xi32>
    %c0_i32_1 = arith.constant 0 : i32
    %7 = vector.broadcast %c0_i32_1 : i32 to vector<16x1xi32>
    %8 = arith.cmpi slt, %4, %7 : vector<16x1xi32>
    %c0_i32_2 = arith.constant 0 : i32
    %9 = arith.cmpi slt, %2, %c0_i32_2 : i32
    %10 = vector.broadcast %9 : i1 to vector<16x1xi1>
    %11 = vector.broadcast %10 : vector<16x1xi1> to vector<16x1xi1>
    %12 = arith.xori %8, %11 : vector<16x1xi1>
    %13 = arith.andi %12, %6 : vector<16x1xi1>
    %14 = vector.broadcast %2 : i32 to vector<16x1xi32>
    %15 = arith.addi %4, %14 : vector<16x1xi32>
    %16 = arith.select %13, %15, %4 : vector<16x1xi1>, vector<16x1xi32>
    %c0_i32_3 = arith.constant 0 : i32
    %17 = vector.broadcast %c0_i32_3 : i32 to vector<16x1xi32>
    %18 = arith.cmpi eq, %16, %17 : vector<16x1xi32>
    %c7_i32 = arith.constant 7 : i32
    %19 = vector.broadcast %c7_i32 : i32 to vector<16x1xi32>
    %20 = arith.cmpi eq, %16, %19 : vector<16x1xi32>
    %21 = tpu.iota {dimensions = array<i32: 1>} : vector<16x128xi32>
    %c0 = arith.constant 0 : index
    %c0_4 = arith.constant 0 : index
    %22 = vector.load %arg1[%c0, %c0_4] : memref<16x1xi32, #tpu.memory_space<vmem>>, vector<16x1xi32>
    %23 = vector.broadcast %22 : vector<16x1xi32> to vector<16x128xi32>
    %24 = arith.cmpi eq, %23, %21 : vector<16x128xi32>
    %25 = arith.extui %24 : vector<16x128xi1> to vector<16x128xi32>
    %26 = arith.sitofp %25 : vector<16x128xi32> to vector<16x128xf32>
    %27 = arith.truncf %26 : vector<16x128xf32> to vector<16x128xbf16>
    %c0_5 = arith.constant 0 : index
    %c0_6 = arith.constant 0 : index
    %28 = vector.load %arg2[%c0_5, %c0_6] : memref<128x128xbf16, #tpu.memory_space<vmem>>, vector<128x128xbf16>
    %cst = arith.constant dense<0.000000e+00> : vector<16x128xf32>
    %29 = tpu.matmul %27, %28, %cst {dimension_numbers = #tpu.dot_dimension_numbers<[1], [0], [0], [1], [0, 0, 1, 1], [], []>} : vector<16x128xbf16>, vector<128x128xbf16>, vector<16x128xf32> -> vector<16x128xf32>
    %c1_i32_7 = arith.constant 1 : i32
    %30 = tpu.dynamic_rotate %29 by %c1_i32_7 dim 0 : vector<16x128xf32>, i32 -> vector<16x128xf32>
    %cst_8 = arith.constant 0.000000e+00 : f32
    %31 = vector.shape_cast %18 : vector<16x1xi1> to vector<16x1xi1>
    %32 = vector.broadcast %31 : vector<16x1xi1> to vector<16x128xi1>
    %33 = vector.broadcast %cst_8 : f32 to vector<16x128xf32>
    %34 = arith.select %32, %33, %30 : vector<16x128xi1>, vector<16x128xf32>
    %c15_i32 = arith.constant 15 : i32
    %35 = tpu.dynamic_rotate %29 by %c15_i32 dim 0 : vector<16x128xf32>, i32 -> vector<16x128xf32>
    %cst_9 = arith.constant 0.000000e+00 : f32
    %36 = vector.shape_cast %20 : vector<16x1xi1> to vector<16x1xi1>
    %37 = vector.broadcast %36 : vector<16x1xi1> to vector<16x128xi1>
    %38 = vector.broadcast %cst_9 : f32 to vector<16x128xf32>
    %39 = arith.select %37, %38, %35 : vector<16x128xi1>, vector<16x128xf32>
    %40 = tpu.concatenate %34, %29, %39 in 1 : vector<16x128xf32>, vector<16x128xf32>, vector<16x128xf32> -> vector<16x384xf32>
    %41 = arith.truncf %40 : vector<16x384xf32> to vector<16x384xbf16>
    %c0_10 = arith.constant 0 : index
    %c0_11 = arith.constant 0 : index
    %42 = vector.load %arg3[%c0_10, %c0_11] : memref<384x256xbf16, #tpu.memory_space<vmem>>, vector<384x256xbf16>
    %cst_12 = arith.constant dense<0.000000e+00> : vector<16x256xf32>
    %43 = tpu.matmul %41, %42, %cst_12 {dimension_numbers = #tpu.dot_dimension_numbers<[1], [0], [0], [1], [0, 0, 1, 1], [], []>} : vector<16x384xbf16>, vector<384x256xbf16>, vector<16x256xf32> -> vector<16x256xf32>
    %c0_13 = arith.constant 0 : index
    %c0_14 = arith.constant 0 : index
    %44 = vector.load %arg4[%c0_13, %c0_14] : memref<1x256xf32, #tpu.memory_space<vmem>>, vector<1x256xf32>
    %45 = vector.broadcast %44 : vector<1x256xf32> to vector<16x256xf32>
    %46 = arith.addf %43, %45 : vector<16x256xf32>
    %cst_15 = arith.constant 0.000000e+00 : f32
    %47 = vector.broadcast %cst_15 : f32 to vector<16x256xf32>
    %48 = arith.cmpf ogt, %46, %47 : vector<16x256xf32>
    %cst_16 = arith.constant 0.00999999977 : f32
    %49 = vector.broadcast %cst_16 : f32 to vector<16x256xf32>
    %50 = arith.mulf %49, %46 : vector<16x256xf32>
    %51 = arith.select %48, %46, %50 : vector<16x256xi1>, vector<16x256xf32>
    %c1_i32_17 = arith.constant 1 : i32
    %52 = tpu.dynamic_rotate %51 by %c1_i32_17 dim 0 : vector<16x256xf32>, i32 -> vector<16x256xf32>
    %cst_18 = arith.constant 0.000000e+00 : f32
    %53 = vector.shape_cast %18 : vector<16x1xi1> to vector<16x1xi1>
    %54 = vector.broadcast %53 : vector<16x1xi1> to vector<16x256xi1>
    %55 = vector.broadcast %cst_18 : f32 to vector<16x256xf32>
    %56 = arith.select %54, %55, %52 : vector<16x256xi1>, vector<16x256xf32>
    %c15_i32_19 = arith.constant 15 : i32
    %57 = tpu.dynamic_rotate %51 by %c15_i32_19 dim 0 : vector<16x256xf32>, i32 -> vector<16x256xf32>
    %cst_20 = arith.constant 0.000000e+00 : f32
    %58 = vector.shape_cast %20 : vector<16x1xi1> to vector<16x1xi1>
    %59 = vector.broadcast %58 : vector<16x1xi1> to vector<16x256xi1>
    %60 = vector.broadcast %cst_20 : f32 to vector<16x256xf32>
    %61 = arith.select %59, %60, %57 : vector<16x256xi1>, vector<16x256xf32>
    %62 = tpu.concatenate %56, %51, %61 in 1 : vector<16x256xf32>, vector<16x256xf32>, vector<16x256xf32> -> vector<16x768xf32>
    %63 = arith.truncf %62 : vector<16x768xf32> to vector<16x768xbf16>
    %c0_21 = arith.constant 0 : index
    %c0_22 = arith.constant 0 : index
    %64 = vector.load %arg5[%c0_21, %c0_22] : memref<768x256xbf16, #tpu.memory_space<vmem>>, vector<768x256xbf16>
    %cst_23 = arith.constant dense<0.000000e+00> : vector<16x256xf32>
    %65 = tpu.matmul %63, %64, %cst_23 {dimension_numbers = #tpu.dot_dimension_numbers<[1], [0], [0], [1], [0, 0, 1, 1], [], []>} : vector<16x768xbf16>, vector<768x256xbf16>, vector<16x256xf32> -> vector<16x256xf32>
    %c0_24 = arith.constant 0 : index
    %c0_25 = arith.constant 0 : index
    %66 = vector.load %arg6[%c0_24, %c0_25] : memref<1x256xf32, #tpu.memory_space<vmem>>, vector<1x256xf32>
    %67 = vector.broadcast %66 : vector<1x256xf32> to vector<16x256xf32>
    %68 = arith.addf %65, %67 : vector<16x256xf32>
    %cst_26 = arith.constant 0.000000e+00 : f32
    %69 = vector.broadcast %cst_26 : f32 to vector<16x256xf32>
    %70 = arith.cmpf ogt, %68, %69 : vector<16x256xf32>
    %cst_27 = arith.constant 0.00999999977 : f32
    %71 = vector.broadcast %cst_27 : f32 to vector<16x256xf32>
    %72 = arith.mulf %71, %68 : vector<16x256xf32>
    %73 = arith.select %70, %68, %72 : vector<16x256xi1>, vector<16x256xf32>
    %c1_i32_28 = arith.constant 1 : i32
    %74 = tpu.dynamic_rotate %73 by %c1_i32_28 dim 0 : vector<16x256xf32>, i32 -> vector<16x256xf32>
    %cst_29 = arith.constant 0.000000e+00 : f32
    %75 = vector.shape_cast %18 : vector<16x1xi1> to vector<16x1xi1>
    %76 = vector.broadcast %75 : vector<16x1xi1> to vector<16x256xi1>
    %77 = vector.broadcast %cst_29 : f32 to vector<16x256xf32>
    %78 = arith.select %76, %77, %74 : vector<16x256xi1>, vector<16x256xf32>
    %c15_i32_30 = arith.constant 15 : i32
    %79 = tpu.dynamic_rotate %73 by %c15_i32_30 dim 0 : vector<16x256xf32>, i32 -> vector<16x256xf32>
    %cst_31 = arith.constant 0.000000e+00 : f32
    %80 = vector.shape_cast %20 : vector<16x1xi1> to vector<16x1xi1>
    %81 = vector.broadcast %80 : vector<16x1xi1> to vector<16x256xi1>
    %82 = vector.broadcast %cst_31 : f32 to vector<16x256xf32>
    %83 = arith.select %81, %82, %79 : vector<16x256xi1>, vector<16x256xf32>
    %84 = tpu.concatenate %78, %73, %83 in 1 : vector<16x256xf32>, vector<16x256xf32>, vector<16x256xf32> -> vector<16x768xf32>
    %85 = arith.truncf %84 : vector<16x768xf32> to vector<16x768xbf16>
    %c0_32 = arith.constant 0 : index
    %c0_33 = arith.constant 0 : index
    %86 = vector.load %arg7[%c0_32, %c0_33] : memref<768x256xbf16, #tpu.memory_space<vmem>>, vector<768x256xbf16>
    %cst_34 = arith.constant dense<0.000000e+00> : vector<16x256xf32>
    %87 = tpu.matmul %85, %86, %cst_34 {dimension_numbers = #tpu.dot_dimension_numbers<[1], [0], [0], [1], [0, 0, 1, 1], [], []>} : vector<16x768xbf16>, vector<768x256xbf16>, vector<16x256xf32> -> vector<16x256xf32>
    %c0_35 = arith.constant 0 : index
    %c0_36 = arith.constant 0 : index
    %88 = vector.load %arg8[%c0_35, %c0_36] : memref<1x256xf32, #tpu.memory_space<vmem>>, vector<1x256xf32>
    %89 = vector.broadcast %88 : vector<1x256xf32> to vector<16x256xf32>
    %90 = arith.addf %87, %89 : vector<16x256xf32>
    %cst_37 = arith.constant 0.000000e+00 : f32
    %91 = vector.broadcast %cst_37 : f32 to vector<16x256xf32>
    %92 = arith.cmpf ogt, %90, %91 : vector<16x256xf32>
    %cst_38 = arith.constant 0.00999999977 : f32
    %93 = vector.broadcast %cst_38 : f32 to vector<16x256xf32>
    %94 = arith.mulf %93, %90 : vector<16x256xf32>
    %95 = arith.select %92, %90, %94 : vector<16x256xi1>, vector<16x256xf32>
    %96 = arith.truncf %95 : vector<16x256xf32> to vector<16x256xbf16>
    %c0_39 = arith.constant 0 : index
    %c0_40 = arith.constant 0 : index
    %97 = vector.load %arg9[%c0_39, %c0_40] : memref<256x128xbf16, #tpu.memory_space<vmem>>, vector<256x128xbf16>
    %cst_41 = arith.constant dense<0.000000e+00> : vector<16x128xf32>
    %98 = tpu.matmul %96, %97, %cst_41 {dimension_numbers = #tpu.dot_dimension_numbers<[1], [0], [0], [1], [0, 0, 1, 1], [], []>} : vector<16x256xbf16>, vector<256x128xbf16>, vector<16x128xf32> -> vector<16x128xf32>
    %c0_42 = arith.constant 0 : index
    %c0_43 = arith.constant 0 : index
    %99 = vector.load %arg10[%c0_42, %c0_43] : memref<1x128xf32, #tpu.memory_space<vmem>>, vector<1x128xf32>
    %100 = vector.broadcast %99 : vector<1x128xf32> to vector<16x128xf32>
    %101 = arith.addf %98, %100 : vector<16x128xf32>
    %cst_44 = arith.constant dense<0xFF800000> : vector<16xf32>
    %102 = vector.multi_reduction <maximumf>, %101, %cst_44 [1] : vector<16x128xf32> to vector<16xf32>
    %103 = vector.shape_cast %102 : vector<16xf32> to vector<16x1xf32>
    %104 = vector.broadcast %103 : vector<16x1xf32> to vector<16x128xf32>
    %105 = arith.subf %101, %104 : vector<16x128xf32>
    %106 = math.exp %105 : vector<16x128xf32>
    %cst_45 = arith.constant dense<0.000000e+00> : vector<16xf32>
    %107 = vector.multi_reduction <add>, %106, %cst_45 [1] : vector<16x128xf32> to vector<16xf32>
    %108 = vector.shape_cast %107 : vector<16xf32> to vector<16x1xf32>
    %109 = tpu.reciprocal %108 {approx = true} : vector<16x1xf32> -> vector<16x1xf32>
    %110 = vector.broadcast %109 : vector<16x1xf32> to vector<16x128xf32>
    %111 = arith.mulf %106, %110 : vector<16x128xf32>
    %c0_46 = arith.constant 0 : index
    %c0_47 = arith.constant 0 : index
    %112 = vector.load %arg11[%c0_46, %c0_47] : memref<16x128xf32, #tpu.memory_space<vmem>>, vector<16x128xf32>
    tpu.vector_store %arg11[%c0_46, %c0_47], %111 {strides = array<i32>} : memref<16x128xf32, #tpu.memory_space<vmem>>, vector<16x128xf32>,
    return
  }
  func.func @transform_0(%arg0: i32) -> (i32, i32) {
    %c0_i32 = arith.constant 0 : i32
    %c0_i32_0 = arith.constant 0 : i32
    return %arg0, %c0_i32 : i32, i32
  }
  func.func @transform_1(%arg0: i32) -> (i32, i32) {
    %c0_i32 = arith.constant 0 : i32
    %c0_i32_0 = arith.constant 0 : i32
    %c0_i32_1 = arith.constant 0 : i32
    return %c0_i32, %c0_i32_0 : i32, i32
  }
  func.func @transform_2(%arg0: i32) -> (i32, i32) {
    %c0_i32 = arith.constant 0 : i32
    %c0_i32_0 = arith.constant 0 : i32
    %c0_i32_1 = arith.constant 0 : i32
    return %c0_i32, %c0_i32_0 : i32, i32
  }
  func.func @transform_3(%arg0: i32) -> (i32, i32) {
    %c0_i32 = arith.constant 0 : i32
    %c0_i32_0 = arith.constant 0 : i32
    %c0_i32_1 = arith.constant 0 : i32
    return %c0_i32, %c0_i32_0 : i32, i32
  }
  func.func @transform_4(%arg0: i32) -> (i32, i32) {
    %c0_i32 = arith.constant 0 : i32
    %c0_i32_0 = arith.constant 0 : i32
    %c0_i32_1 = arith.constant 0 : i32
    return %c0_i32, %c0_i32_0 : i32, i32
  }
  func.func @transform_5(%arg0: i32) -> (i32, i32) {
    %c0_i32 = arith.constant 0 : i32
    %c0_i32_0 = arith.constant 0 : i32
    %c0_i32_1 = arith.constant 0 : i32
    return %c0_i32, %c0_i32_0 : i32, i32
  }
  func.func @transform_6(%arg0: i32) -> (i32, i32) {
    %c0_i32 = arith.constant 0 : i32
    %c0_i32_0 = arith.constant 0 : i32
    %c0_i32_1 = arith.constant 0 : i32
    return %c0_i32, %c0_i32_0 : i32, i32
  }
  func.func @transform_7(%arg0: i32) -> (i32, i32) {
    %c0_i32 = arith.constant 0 : i32
    %c0_i32_0 = arith.constant 0 : i32
    %c0_i32_1 = arith.constant 0 : i32
    return %c0_i32, %c0_i32_0 : i32, i32
  }
  func.func @transform_8(%arg0: i32) -> (i32, i32) {
    %c0_i32 = arith.constant 0 : i32
    %c0_i32_0 = arith.constant 0 : i32
    %c0_i32_1 = arith.constant 0 : i32
    return %c0_i32, %c0_i32_0 : i32, i32
  }
  func.func @transform_9(%arg0: i32) -> (i32, i32) {
    %c0_i32 = arith.constant 0 : i32
    %c0_i32_0 = arith.constant 0 : i32
    %c0_i32_1 = arith.constant 0 : i32
    return %c0_i32, %c0_i32_0 : i32, i32
  }
  func.func @transform_10(%arg0: i32) -> (i32, i32) {
    %c0_i32 = arith.constant 0 : i32
    %c0_i32_0 = arith.constant 0 : i32
    return %arg0, %c0_i32 : i32, i32
  }
}

</mosaic_0001>

<llo_original>
// kernel: cnn_forward.1
$region0: #{cnn_forward.1}
  #allocation0 [shape = 'u32[]', space=smem, size = 0x4, offset = 0x4, fixed_abs, tag = 'smem constant byte address 0x4 - core index']
  #allocation1 [shape = 'u32[144,128]{1,0:T(1,128)}', space=vmem, size = 0x12000, scoped, tag = 'internal scratch']
  %s0 = inlined_call_operand.vmem [shape: s32[16,1], index: 0, kind: input, shape index: {}]
  %s1 = inlined_call_operand.vmem [shape: bf16[128,128], index: 1, kind: input, shape index: {}]
  %s2 = inlined_call_operand.vmem [shape: bf16[384,256], index: 2, kind: input, shape index: {}]
  %s3 = inlined_call_operand.vmem [shape: f32[1,256], index: 3, kind: input, shape index: {}]
  %s4 = inlined_call_operand.vmem [shape: bf16[768,256], index: 4, kind: input, shape index: {}]
  %s5 = inlined_call_operand.vmem [shape: f32[1,256], index: 5, kind: input, shape index: {}]
  %s6 = inlined_call_operand.vmem [shape: bf16[768,256], index: 6, kind: input, shape index: {}]
  %s7 = inlined_call_operand.vmem [shape: f32[1,256], index: 7, kind: input, shape index: {}]
  %s8 = inlined_call_operand.vmem [shape: bf16[256,128], index: 8, kind: input, shape index: {}]
  %s9 = inlined_call_operand.vmem [shape: f32[1,128], index: 9, kind: input, shape index: {}]
  %s10 = inlined_call_operand.vmem [shape: f32[16,128], index: 10, kind: output, shape index: {}]
  %s11 = sld [smem:[#allocation0]]
  $region50: #{cnn_forward.1} parent=0
    _
  %s13 = ssub.s32 1, %s11
  %s14 = scalar_select 0, %s13, %s11
  // Predicated region
  $region2: #{cnn_forward.1} parent=0 // pred_check
    _
  $region3: #{cnn_forward.1} parent=0 // pred_check_branch
    %16 = sbr.rel (0) target = $region5
  $region4: #{cnn_forward.1} parent=0 // pred_region
    _
  $region5: #{cnn_forward.1} parent=0 // pred_fallthru
    _
  // Predicated region
  $region6: #{cnn_forward.1} parent=0 // pred_check
    _
  $region7: #{cnn_forward.1} parent=0 // pred_check_branch
    %18 = sbr.rel (0) target = $region9
  $region8: #{cnn_forward.1} parent=0 // pred_region
    _
  $region9: #{cnn_forward.1} parent=0 // pred_fallthru
    _
  // Predicated region
  $region10: #{cnn_forward.1} parent=0 // pred_check
    _
  $region11: #{cnn_forward.1} parent=0 // pred_check_branch
    %20 = sbr.rel (0) target = $region13
  $region12: #{cnn_forward.1} parent=0 // pred_region
    _
  $region13: #{cnn_forward.1} parent=0 // pred_fallthru
    _
  // Predicated region
  $region14: #{cnn_forward.1} parent=0 // pred_check
    _
  $region15: #{cnn_forward.1} parent=0 // pred_check_branch
    %22 = sbr.rel (0) target = $region17
  $region16: #{cnn_forward.1} parent=0 // pred_region
    _
  $region17: #{cnn_forward.1} parent=0 // pred_fallthru
    _
  // Predicated region
  $region18: #{cnn_forward.1} parent=0 // pred_check
    _
  $region19: #{cnn_forward.1} parent=0 // pred_check_branch
    %24 = sbr.rel (0) target = $region21
  $region20: #{cnn_forward.1} parent=0 // pred_region
    _
  $region21: #{cnn_forward.1} parent=0 // pred_fallthru
    _
  // Predicated region
  $region22: #{cnn_forward.1} parent=0 // pred_check
    _
  $region23: #{cnn_forward.1} parent=0 // pred_check_branch
    %26 = sbr.rel (0) target = $region25
  $region24: #{cnn_forward.1} parent=0 // pred_region
    _
  $region25: #{cnn_forward.1} parent=0 // pred_fallthru
    _
  // Predicated region
  $region26: #{cnn_forward.1} parent=0 // pred_check
    _
  $region27: #{cnn_forward.1} parent=0 // pred_check_branch
    %28 = sbr.rel (0) target = $region29
  $region28: #{cnn_forward.1} parent=0 // pred_region
    _
  $region29: #{cnn_forward.1} parent=0 // pred_fallthru
    _
  // Predicated region
  $region30: #{cnn_forward.1} parent=0 // pred_check
    _
  $region31: #{cnn_forward.1} parent=0 // pred_check_branch
    %30 = sbr.rel (0) target = $region33
  $region32: #{cnn_forward.1} parent=0 // pred_region
    _
  $region33: #{cnn_forward.1} parent=0 // pred_fallthru
    _
  // Predicated region
  $region34: #{cnn_forward.1} parent=0 // pred_check
    _
  $region35: #{cnn_forward.1} parent=0 // pred_check_branch
    %32 = sbr.rel (0) target = $region37
  $region36: #{cnn_forward.1} parent=0 // pred_region
    _
  $region37: #{cnn_forward.1} parent=0 // pred_fallthru
    _
  // Predicated region
  $region38: #{cnn_forward.1} parent=0 // pred_check
    _
  $region39: #{cnn_forward.1} parent=0 // pred_check_branch
    %34 = sbr.rel (0) target = $region41
  $region40: #{cnn_forward.1} parent=0 // pred_region
    _
  $region41: #{cnn_forward.1} parent=0 // pred_fallthru
    _
  %v36 = vlaneseq
  %v37 = vshrl.u32 %v36, 7
  %v38 = vadd.s32 %v37, 8
  %vm39 = vcmp.lt.s32.totalorder %v37, 0
  %v40 = vsub.s32 0, %v37
  %v41 = vsel %vm39, %v40, %v37
  %v42 = vshrl.u32 %v41, 3
  %v43 = vand.u32 %v41, 7
  %v44 = vsub.s32 0, %v43
  %v45 = vsel %vm39, %v44, %v43
  %vm46 = vcmp.lt.s32.totalorder %v38, 0
  %v47 = vsub.s32 0, %v38
  %v48 = vsel %vm46, %v47, %v38
  %v49 = vshrl.u32 %v48, 3
  %v50 = vand.u32 %v48, 7
  %v51 = vsub.s32 0, %v50
  %v52 = vsel %vm46, %v51, %v50
  %vm53 = vcmp.ne.s32.totalorder %v45, 0
  %vm54 = vcmp.ne.s32.totalorder %v52, 0
  %vm55 = vcmp.lt.s32.totalorder %v45, 0
  %vm56 = vcmp.lt.s32.totalorder %v52, 0
  %vm57 = vmand %vm55, %vm53
  %vm58 = vmand %vm56, %vm54
  %v59 = vadd.s32 %v45, 8
  %v60 = vadd.s32 %v52, 8
  %v61 = vsel %vm57, %v59, %v45
  %v62 = vsel %vm58, %v60, %v52
  %vm63 = vcmp.eq.s32.totalorder %v61, 0
  %vm64 = vcmp.eq.s32.totalorder %v62, 0
  %vm65 = vcmp.eq.s32.totalorder %v61, 7
  %vm66 = vcmp.eq.s32.totalorder %v62, 7
  %v67 = vlaneseq
  %v68 = vand.u32 %v67, 127
  %v69 = vld [vmem:[%s0] sm:$0xff]
  %v70 = vld [vmem:[%s0 + $0x8] sm:$0xff]
  %71 = vset.pattern.permute.xlu0 0
  %72 = vperm.xlu0 %71, %v69
  %v73 = vpop.permute.xlu0 %72
  %74 = vset.pattern.permute.xlu0 0
  %75 = vperm.xlu0 %74, %v70
  %v76 = vpop.permute.xlu0 %75
  %vm77 = vcmp.eq.s32.totalorder %v73, %v68
  %vm78 = vcmp.eq.s32.totalorder %v76, %v68
  %v79 = vsel %vm77, 1, 0
  %v80 = vsel %vm78, 1, 0
  %v81 = vcvt.s32.f32 %v79
  %v82 = vcvt.s32.f32 %v80
  %v83 = vpack.c.bf16 %v82, %v81
  %v84 = vld [vmem:[%s1] sm:$0xf]
  %v85 = vld [vmem:[%s1 + $0x4] sm:$0xf]
  %v86 = vld [vmem:[%s1 + $0x8] sm:$0xf]
  %v87 = vld [vmem:[%s1 + $0xc] sm:$0xf]
  %v88 = vld [vmem:[%s1 + $0x10] sm:$0xf]
  %v89 = vld [vmem:[%s1 + $0x14] sm:$0xf]
  %v90 = vld [vmem:[%s1 + $0x18] sm:$0xf]
  %v91 = vld [vmem:[%s1 + $0x1c] sm:$0xf]
  %v92 = vld [vmem:[%s1 + $0x20] sm:$0xf]
  %v93 = vld [vmem:[%s1 + $0x24] sm:$0xf]
  %v94 = vld [vmem:[%s1 + $0x28] sm:$0xf]
  %v95 = vld [vmem:[%s1 + $0x2c] sm:$0xf]
  %v96 = vld [vmem:[%s1 + $0x30] sm:$0xf]
  %v97 = vld [vmem:[%s1 + $0x34] sm:$0xf]
  %v98 = vld [vmem:[%s1 + $0x38] sm:$0xf]
  %v99 = vld [vmem:[%s1 + $0x3c] sm:$0xf]
  %v116 = vunpack.c.l.b16 %v84
  %v117 = vunpack.c.l.b16 %v85
  %v118 = vunpack.c.l.b16 %v86
  %v119 = vunpack.c.l.b16 %v87
  %v120 = vunpack.c.l.b16 %v88
  %v121 = vunpack.c.l.b16 %v89
  %v122 = vunpack.c.l.b16 %v90
  %v123 = vunpack.c.l.b16 %v91
  %v124 = vunpack.c.l.b16 %v92
  %v125 = vunpack.c.l.b16 %v93
  %v126 = vunpack.c.l.b16 %v94
  %v127 = vunpack.c.l.b16 %v95
  %v128 = vunpack.c.l.b16 %v96
  %v129 = vunpack.c.l.b16 %v97
  %v130 = vunpack.c.l.b16 %v98
  %v131 = vunpack.c.l.b16 %v99
  %v132 = vpack.c.b16 %v117, %v116
  %v133 = vpack.c.b16 %v119, %v118
  %v134 = vpack.c.b16 %v121, %v120
  %v135 = vpack.c.b16 %v123, %v122
  %v136 = vpack.c.b16 %v125, %v124
  %v137 = vpack.c.b16 %v127, %v126
  %v138 = vpack.c.b16 %v129, %v128
  %v139 = vpack.c.b16 %v131, %v130
  %148 = vmatprep.subr.bf16.mxu0 0
  %149 = vmatpush1.bf16.msra.mxu0 %v132
  %150 = vmatprep.subr.bf16.mxu0 0
  %151 = vmatpush1.bf16.msra.mxu0 %v133
  %152 = vmatprep.subr.bf16.mxu0 0
  %153 = vmatpush1.bf16.msra.mxu0 %v134
  %154 = vmatprep.subr.bf16.mxu0 0
  %155 = vmatpush1.bf16.msra.mxu0 %v135
  %156 = vmatprep.subr.bf16.mxu0 0
  %157 = vmatpush1.bf16.msra.mxu0 %v136
  %158 = vmatprep.subr.bf16.mxu0 0
  %159 = vmatpush1.bf16.msra.mxu0 %v137
  %160 = vmatprep.subr.bf16.mxu0 0
  %161 = vmatpush1.bf16.msra.mxu0 %v138
  %162 = vmatprep.subr.bf16.mxu0 0
  %163 = vmatpush1.bf16.msra.mxu0 %v139
  %164 = vmatprep.subr.bf16.mxu0 0
  %165 = vmatpush1.bf16.msra.mxu0 0
  %166 = vmatprep.subr.bf16.mxu0 0
  %167 = vmatpush1.bf16.msra.mxu0 0
  %168 = vmatprep.subr.bf16.mxu0 0
  %169 = vmatpush1.bf16.msra.mxu0 0
  %170 = vmatprep.subr.bf16.mxu0 0
  %171 = vmatpush1.bf16.msra.mxu0 0
  %172 = vmatprep.subr.bf16.mxu0 0
  %173 = vmatpush1.bf16.msra.mxu0 0
  %174 = vmatprep.subr.bf16.mxu0 0
  %175 = vmatpush1.bf16.msra.mxu0 0
  %176 = vmatprep.subr.bf16.mxu0 0
  %177 = vmatpush1.bf16.msra.mxu0 0
  %178 = vmatprep.subr.bf16.mxu0 0
  %179 = vmatpush1.bf16.msra.mxu0 0
  %180 = vmatprep.mubr.bf16.mxu0 0
  %181 = vmatmul.mubr.bf16.gmra.mrb[0].mxu0 %v83
  %v182 = vpop.f32.mrb[0].mxu0
  %v183 = vadd.f32 0.0, %v182
  %v184 = vpop.f32.mrb[0].mxu0
  %v185 = vpop.f32.mrb[0].mxu0
  %v186 = vadd.f32 0.0, %v185
  %v187 = vpop.f32.mrb[0].mxu0
  %188 = vdwg.mxu0
  %v189 = vrot.slane %v183, 7
  %v190 = vrot.slane %v186, 7
  %vm191 = vcmp.lt.s32.totalorder %v37, 1
  %v192 = vsel %vm191, %v189, %v190
  %v193 = vsel %vm191, %v190, %v189
  %v194 = vsel %vm63, 1, 0
  %v195 = vsel %vm64, 1, 0
  %vm196 = vcmp.eq.s32.totalorder %v194, 1
  %vm197 = vcmp.eq.s32.totalorder %v195, 1
  %v198 = vsel %vm196, 0.0, %v193
  %v199 = vsel %vm197, 0.0, %v192
  %v200 = vrot.slane %v183, 1
  %v201 = vrot.slane %v186, 1
  %vm202 = vcmp.lt.s32.totalorder %v37, 7
  %v203 = vsel %vm202, %v200, %v201
  %v204 = vsel %vm202, %v201, %v200
  %v205 = vsel %vm65, 1, 0
  %v206 = vsel %vm66, 1, 0
  %vm207 = vcmp.eq.s32.totalorder %v205, 1
  %vm208 = vcmp.eq.s32.totalorder %v206, 1
  %v209 = vsel %vm207, 0.0, %v203
  %v210 = vsel %vm208, 0.0, %v204
  %v211 = vpack.c.bf16 %v199, %v198
  %v212 = vpack.c.bf16 %v186, %v183
  %v213 = vpack.c.bf16 %v210, %v209
  %v214 = vld [vmem:[%s2] sm:$0xff]
  %v215 = vld [vmem:[%s2 + $0x8] sm:$0xff]
  %v216 = vld [vmem:[%s2 + $0x10] sm:$0xff]
  %v217 = vld [vmem:[%s2 + $0x18] sm:$0xff]
  %v218 = vld [vmem:[%s2 + $0x20] sm:$0xff]
  %v219 = vld [vmem:[%s2 + $0x28] sm:$0xff]
  %v220 = vld [vmem:[%s2 + $0x30] sm:$0xff]
  %v221 = vld [vmem:[%s2 + $0x38] sm:$0xff]
  %v222 = vld [vmem:[%s2 + $0x40] sm:$0xff]
  %v223 = vld [vmem:[%s2 + $0x48] sm:$0xff]
  %v224 = vld [vmem:[%s2 + $0x50] sm:$0xff]
  %v225 = vld [vmem:[%s2 + $0x58] sm:$0xff]
  %v226 = vld [vmem:[%s2 + $0x60] sm:$0xff]
  %v227 = vld [vmem:[%s2 + $0x68] sm:$0xff]
  %v228 = vld [vmem:[%s2 + $0x70] sm:$0xff]
  %v229 = vld [vmem:[%s2 + $0x78] sm:$0xff]
  %v230 = vld [vmem:[%s2 + $0x80] sm:$0xff]
  %v231 = vld [vmem:[%s2 + $0x88] sm:$0xff]
  %v232 = vld [vmem:[%s2 + $0x90] sm:$0xff]
  %v233 = vld [vmem:[%s2 + $0x98] sm:$0xff]
  %v234 = vld [vmem:[%s2 + $0xa0] sm:$0xff]
  %v235 = vld [vmem:[%s2 + $0xa8] sm:$0xff]
  %v236 = vld [vmem:[%s2 + $0xb0] sm:$0xff]
  %v237 = vld [vmem:[%s2 + $0xb8] sm:$0xff]
  %v238 = vld [vmem:[%s2 + $0xc0] sm:$0xff]
  %v239 = vld [vmem:[%s2 + $0xc8] sm:$0xff]
  %v240 = vld [vmem:[%s2 + $0xd0] sm:$0xff]
  %v241 = vld [vmem:[%s2 + $0xd8] sm:$0xff]
  %v242 = vld [vmem:[%s2 + $0xe0] sm:$0xff]
  %v243 = vld [vmem:[%s2 + $0xe8] sm:$0xff]
  %v244 = vld [vmem:[%s2 + $0xf0] sm:$0xff]
  %v245 = vld [vmem:[%s2 + $0xf8] sm:$0xff]
  %v246 = vld [vmem:[%s2 + $0x100] sm:$0xff]
  %v247 = vld [vmem:[%s2 + $0x108] sm:$0xff]
  %v248 = vld [vmem:[%s2 + $0x110] sm:$0xff]
  %v249 = vld [vmem:[%s2 + $0x118] sm:$0xff]
  %v250 = vld [vmem:[%s2 + $0x120] sm:$0xff]
  %v251 = vld [vmem:[%s2 + $0x128] sm:$0xff]
  %v252 = vld [vmem:[%s2 + $0x130] sm:$0xff]
  %v253 = vld [vmem:[%s2 + $0x138] sm:$0xff]
  %v254 = vld [vmem:[%s2 + $0x140] sm:$0xff]
  %v255 = vld [vmem:[%s2 + $0x148] sm:$0xff]
  %v256 = vld [vmem:[%s2 + $0x150] sm:$0xff]
  %v257 = vld [vmem:[%s2 + $0x158] sm:$0xff]
  %v258 = vld [vmem:[%s2 + $0x160] sm:$0xff]
  %v259 = vld [vmem:[%s2 + $0x168] sm:$0xff]
  %v260 = vld [vmem:[%s2 + $0x170] sm:$0xff]
  %v261 = vld [vmem:[%s2 + $0x178] sm:$0xff]
  %v262 = vld [vmem:[%s3] sm:$0x3]
  %v264 = vlaneseq
  %v265 = vshrl.u32 %v264, 7
  %v266 = vsub.s32 0, %v265
  %v267 = vrot.slane %v262, %v266
  %v268 = vlaneseq
  %v269 = vshrl.u32 %v268, 7
  %v270 = vsub.s32 1, %v269
  %v271 = vrot.slane %v262, %v270
  %v322 = vunpack.c.l.b16 %v214
  %v323 = vunpack.c.h.b16 %v214
  %v324 = vunpack.c.l.b16 %v215
  %v325 = vunpack.c.h.b16 %v215
  %v326 = vunpack.c.l.b16 %v216
  %v327 = vunpack.c.h.b16 %v216
  %v328 = vunpack.c.l.b16 %v217
  %v329 = vunpack.c.h.b16 %v217
  %v330 = vunpack.c.l.b16 %v218
  %v331 = vunpack.c.h.b16 %v218
  %v332 = vunpack.c.l.b16 %v219
  %v333 = vunpack.c.h.b16 %v219
  %v334 = vunpack.c.l.b16 %v220
  %v335 = vunpack.c.h.b16 %v220
  %v336 = vunpack.c.l.b16 %v221
  %v337 = vunpack.c.h.b16 %v221
  %v338 = vunpack.c.l.b16 %v222
  %v339 = vunpack.c.h.b16 %v222
  %v340 = vunpack.c.l.b16 %v223
  %v341 = vunpack.c.h.b16 %v223
  %v342 = vunpack.c.l.b16 %v224
  %v343 = vunpack.c.h.b16 %v224
  %v344 = vunpack.c.l.b16 %v225
  %v345 = vunpack.c.h.b16 %v225
  %v346 = vunpack.c.l.b16 %v226
  %v347 = vunpack.c.h.b16 %v226
  %v348 = vunpack.c.l.b16 %v227
  %v349 = vunpack.c.h.b16 %v227
  %v350 = vunpack.c.l.b16 %v228
  %v351 = vunpack.c.h.b16 %v228
  %v352 = vunpack.c.l.b16 %v229
  %v353 = vunpack.c.h.b16 %v229
  %v354 = vunpack.c.l.b16 %v230
  %v355 = vunpack.c.h.b16 %v230
  %v356 = vunpack.c.l.b16 %v231
  %v357 = vunpack.c.h.b16 %v231
  %v358 = vunpack.c.l.b16 %v232
  %v359 = vunpack.c.h.b16 %v232
  %v360 = vunpack.c.l.b16 %v233
  %v361 = vunpack.c.h.b16 %v233
  %v362 = vunpack.c.l.b16 %v234
  %v363 = vunpack.c.h.b16 %v234
  %v364 = vunpack.c.l.b16 %v235
  %v365 = vunpack.c.h.b16 %v235
  %v366 = vunpack.c.l.b16 %v236
  %v367 = vunpack.c.h.b16 %v236
  %v368 = vunpack.c.l.b16 %v237
  %v369 = vunpack.c.h.b16 %v237
  %v370 = vunpack.c.l.b16 %v238
  %v371 = vunpack.c.h.b16 %v238
  %v372 = vunpack.c.l.b16 %v239
  %v373 = vunpack.c.h.b16 %v239
  %v374 = vunpack.c.l.b16 %v240
  %v375 = vunpack.c.h.b16 %v240
  %v376 = vunpack.c.l.b16 %v241
  %v377 = vunpack.c.h.b16 %v241
  %v378 = vunpack.c.l.b16 %v242
  %v379 = vunpack.c.h.b16 %v242
  %v380 = vunpack.c.l.b16 %v243
  %v381 = vunpack.c.h.b16 %v243
  %v382 = vunpack.c.l.b16 %v244
  %v383 = vunpack.c.h.b16 %v244
  %v384 = vunpack.c.l.b16 %v245
  %v385 = vunpack.c.h.b16 %v245
  %v386 = vunpack.c.l.b16 %v246
  %v387 = vunpack.c.h.b16 %v246
  %v388 = vunpack.c.l.b16 %v247
  %v389 = vunpack.c.h.b16 %v247
  %v390 = vunpack.c.l.b16 %v248
  %v391 = vunpack.c.h.b16 %v248
  %v392 = vunpack.c.l.b16 %v249
  %v393 = vunpack.c.h.b16 %v249
  %v394 = vunpack.c.l.b16 %v250
  %v395 = vunpack.c.h.b16 %v250
  %v396 = vunpack.c.l.b16 %v251
  %v397 = vunpack.c.h.b16 %v251
  %v398 = vunpack.c.l.b16 %v252
  %v399 = vunpack.c.h.b16 %v252
  %v400 = vunpack.c.l.b16 %v253
  %v401 = vunpack.c.h.b16 %v253
  %v402 = vunpack.c.l.b16 %v254
  %v403 = vunpack.c.h.b16 %v254
  %v404 = vunpack.c.l.b16 %v255
  %v405 = vunpack.c.h.b16 %v255
  %v406 = vunpack.c.l.b16 %v256
  %v407 = vunpack.c.h.b16 %v256
  %v408 = vunpack.c.l.b16 %v257
  %v409 = vunpack.c.h.b16 %v257
  %v410 = vunpack.c.l.b16 %v258
  %v411 = vunpack.c.h.b16 %v258
  %v412 = vunpack.c.l.b16 %v259
  %v413 = vunpack.c.h.b16 %v259
  %v414 = vunpack.c.l.b16 %v260
  %v415 = vunpack.c.h.b16 %v260
  %v416 = vunpack.c.l.b16 %v261
  %v417 = vunpack.c.h.b16 %v261
  %v418 = vpack.c.b16 %v324, %v322
  %v419 = vpack.c.b16 %v325, %v323
  %v420 = vpack.c.b16 %v328, %v326
  %v421 = vpack.c.b16 %v329, %v327
  %v422 = vpack.c.b16 %v332, %v330
  %v423 = vpack.c.b16 %v333, %v331
  %v424 = vpack.c.b16 %v336, %v334
  %v425 = vpack.c.b16 %v337, %v335
  %v426 = vpack.c.b16 %v340, %v338
  %v427 = vpack.c.b16 %v341, %v339
  %v428 = vpack.c.b16 %v344, %v342
  %v429 = vpack.c.b16 %v345, %v343
  %v430 = vpack.c.b16 %v348, %v346
  %v431 = vpack.c.b16 %v349, %v347
  %v432 = vpack.c.b16 %v352, %v350
  %v433 = vpack.c.b16 %v353, %v351
  %v434 = vpack.c.b16 %v356, %v354
  %v435 = vpack.c.b16 %v357, %v355
  %v436 = vpack.c.b16 %v360, %v358
  %v437 = vpack.c.b16 %v361, %v359
  %v438 = vpack.c.b16 %v364, %v362
  %v439 = vpack.c.b16 %v365, %v363
  %v440 = vpack.c.b16 %v368, %v366
  %v441 = vpack.c.b16 %v369, %v367
  %v442 = vpack.c.b16 %v372, %v370
  %v443 = vpack.c.b16 %v373, %v371
  %v444 = vpack.c.b16 %v376, %v374
  %v445 = vpack.c.b16 %v377, %v375
  %v446 = vpack.c.b16 %v380, %v378
  %v447 = vpack.c.b16 %v381, %v379
  %v448 = vpack.c.b16 %v384, %v382
  %v449 = vpack.c.b16 %v385, %v383
  %v450 = vpack.c.b16 %v388, %v386
  %v451 = vpack.c.b16 %v389, %v387
  %v452 = vpack.c.b16 %v392, %v390
  %v453 = vpack.c.b16 %v393, %v391
  %v454 = vpack.c.b16 %v396, %v394
  %v455 = vpack.c.b16 %v397, %v395
  %v456 = vpack.c.b16 %v400, %v398
  %v457 = vpack.c.b16 %v401, %v399
  %v458 = vpack.c.b16 %v404, %v402
  %v459 = vpack.c.b16 %v405, %v403
  %v460 = vpack.c.b16 %v408, %v406
  %v461 = vpack.c.b16 %v409, %v407
  %v462 = vpack.c.b16 %v412, %v410
  %v463 = vpack.c.b16 %v413, %v411
  %v464 = vpack.c.b16 %v416, %v414
  %v465 = vpack.c.b16 %v417, %v415
  %514 = vmatprep.subr.bf16.mxu0 %v419
  %515 = vmatpush1.bf16.msra.mxu0 %v418
  %516 = vmatprep.subr.bf16.mxu0 %v421
  %517 = vmatpush1.bf16.msra.mxu0 %v420
  %518 = vmatprep.subr.bf16.mxu0 %v423
  %519 = vmatpush1.bf16.msra.mxu0 %v422
  %520 = vmatprep.subr.bf16.mxu0 %v425
  %521 = vmatpush1.bf16.msra.mxu0 %v424
  %522 = vmatprep.subr.bf16.mxu0 %v427
  %523 = vmatpush1.bf16.msra.mxu0 %v426
  %524 = vmatprep.subr.bf16.mxu0 %v429
  %525 = vmatpush1.bf16.msra.mxu0 %v428
  %526 = vmatprep.subr.bf16.mxu0 %v431
  %527 = vmatpush1.bf16.msra.mxu0 %v430
  %528 = vmatprep.subr.bf16.mxu0 %v433
  %529 = vmatpush1.bf16.msra.mxu0 %v432
  %530 = vmatprep.subr.bf16.mxu0 %v435
  %531 = vmatpush1.bf16.msra.mxu0 %v434
  %532 = vmatprep.subr.bf16.mxu0 %v437
  %533 = vmatpush1.bf16.msra.mxu0 %v436
  %534 = vmatprep.subr.bf16.mxu0 %v439
  %535 = vmatpush1.bf16.msra.mxu0 %v438
  %536 = vmatprep.subr.bf16.mxu0 %v441
  %537 = vmatpush1.bf16.msra.mxu0 %v440
  %538 = vmatprep.subr.bf16.mxu0 %v443
  %539 = vmatpush1.bf16.msra.mxu0 %v442
  %540 = vmatprep.subr.bf16.mxu0 %v445
  %541 = vmatpush1.bf16.msra.mxu0 %v444
  %542 = vmatprep.subr.bf16.mxu0 %v447
  %543 = vmatpush1.bf16.msra.mxu0 %v446
  %544 = vmatprep.subr.bf16.mxu0 %v449
  %545 = vmatpush1.bf16.msra.mxu0 %v448
  %546 = vmatprep.mubr.bf16.mxu0 %v212
  %547 = vmatmul.mubr.bf16.gmra.mrb[0].mxu0 %v211
  %v548 = vpop.f32.mrb[0].mxu0
  %v549 = vadd.f32 %v267, %v548
  %v550 = vpop.f32.mrb[0].mxu0
  %v551 = vadd.f32 %v271, %v550
  %v552 = vpop.f32.mrb[0].mxu0
  %v553 = vadd.f32 %v267, %v552
  %v554 = vpop.f32.mrb[0].mxu0
  %v555 = vadd.f32 %v271, %v554
  %556 = vdwg.mxu0
  %557 = vmatprep.subr.bf16.mxu0 %v451
  %558 = vmatpush1.bf16.msra.mxu0 %v450
  %559 = vmatprep.subr.bf16.mxu0 %v453
  %560 = vmatpush1.bf16.msra.mxu0 %v452
  %561 = vmatprep.subr.bf16.mxu0 %v455
  %562 = vmatpush1.bf16.msra.mxu0 %v454
  %563 = vmatprep.subr.bf16.mxu0 %v457
  %564 = vmatpush1.bf16.msra.mxu0 %v456
  %565 = vmatprep.subr.bf16.mxu0 %v459
  %566 = vmatpush1.bf16.msra.mxu0 %v458
  %567 = vmatprep.subr.bf16.mxu0 %v461
  %568 = vmatpush1.bf16.msra.mxu0 %v460
  %569 = vmatprep.subr.bf16.mxu0 %v463
  %570 = vmatpush1.bf16.msra.mxu0 %v462
  %571 = vmatprep.subr.bf16.mxu0 %v465
  %572 = vmatpush1.bf16.msra.mxu0 %v464
  %573 = vmatprep.subr.bf16.mxu0 0
  %574 = vmatpush1.bf16.msra.mxu0 0
  %575 = vmatprep.subr.bf16.mxu0 0
  %576 = vmatpush1.bf16.msra.mxu0 0
  %577 = vmatprep.subr.bf16.mxu0 0
  %578 = vmatpush1.bf16.msra.mxu0 0
  %579 = vmatprep.subr.bf16.mxu0 0
  %580 = vmatpush1.bf16.msra.mxu0 0
  %581 = vmatprep.subr.bf16.mxu0 0
  %582 = vmatpush1.bf16.msra.mxu0 0
  %583 = vmatprep.subr.bf16.mxu0 0
  %584 = vmatpush1.bf16.msra.mxu0 0
  %585 = vmatprep.subr.bf16.mxu0 0
  %586 = vmatpush1.bf16.msra.mxu0 0
  %587 = vmatprep.subr.bf16.mxu0 0
  %588 = vmatpush1.bf16.msra.mxu0 0
  %589 = vmatprep.mubr.bf16.mxu0 0
  %590 = vmatmul.mubr.bf16.gmra.mrb[0].mxu0 %v213
  %v591 = vpop.f32.mrb[0].mxu0
  %v592 = vadd.f32 %v549, %v591
  %v593 = vpop.f32.mrb[0].mxu0
  %v594 = vadd.f32 %v551, %v593
  %v595 = vpop.f32.mrb[0].mxu0
  %v596 = vadd.f32 %v553, %v595
  %v597 = vpop.f32.mrb[0].mxu0
  %v598 = vadd.f32 %v555, %v597
  %599 = vdwg.mxu0
  %vm600 = vcmp.gt.f32.partialorder %v592, 0.0
  %vm601 = vcmp.gt.f32.partialorder %v594, 0.0
  %vm602 = vcmp.gt.f32.partialorder %v596, 0.0
  %vm603 = vcmp.gt.f32.partialorder %v598, 0.0
  %v604 = vmul.f32 %v592, 0.01
  %v605 = vmul.f32 %v594, 0.01
  %v606 = vmul.f32 %v596, 0.01
  %v607 = vmul.f32 %v598, 0.01
  %v608 = vsel %vm600, %v592, %v604
  %v609 = vsel %vm601, %v594, %v605
  %v610 = vsel %vm602, %v596, %v606
  %v611 = vsel %vm603, %v598, %v607
  %v612 = vrot.slane %v608, 7
  %v613 = vrot.slane %v609, 7
  %v614 = vrot.slane %v610, 7
  %v615 = vrot.slane %v611, 7
  %v616 = vsel %vm191, %v612, %v614
  %v617 = vsel %vm191, %v613, %v615
  %v618 = vsel %vm191, %v614, %v612
  %v619 = vsel %vm191, %v615, %v613
  %v620 = vsel %vm196, 0.0, %v618
  %v621 = vsel %vm196, 0.0, %v619
  %v622 = vsel %vm197, 0.0, %v616
  %v623 = vsel %vm197, 0.0, %v617
  %v624 = vrot.slane %v608, 1
  %v625 = vrot.slane %v609, 1
  %v626 = vrot.slane %v610, 1
  %v627 = vrot.slane %v611, 1
  %v628 = vsel %vm202, %v624, %v626
  %v629 = vsel %vm202, %v625, %v627
  %v630 = vsel %vm202, %v626, %v624
  %v631 = vsel %vm202, %v627, %v625
  %v632 = vsel %vm207, 0.0, %v628
  %v633 = vsel %vm207, 0.0, %v629
  %v634 = vsel %vm208, 0.0, %v630
  %v635 = vsel %vm208, 0.0, %v631
  %v636 = vpack.c.bf16 %v622, %v620
  %v637 = vpack.c.bf16 %v623, %v621
  %v638 = vpack.c.bf16 %v610, %v608
  %v639 = vpack.c.bf16 %v611, %v609
  %v640 = vpack.c.bf16 %v634, %v632
  %v641 = vpack.c.bf16 %v635, %v633
  %v642 = vld [vmem:[%s4] sm:$0xff]
  %v643 = vld [vmem:[%s4 + $0x8] sm:$0xff]
  %v644 = vld [vmem:[%s4 + $0x10] sm:$0xff]
  %v645 = vld [vmem:[%s4 + $0x18] sm:$0xff]
  %v646 = vld [vmem:[%s4 + $0x20] sm:$0xff]
  %v647 = vld [vmem:[%s4 + $0x28] sm:$0xff]
  %v648 = vld [vmem:[%s4 + $0x30] sm:$0xff]
  %v649 = vld [vmem:[%s4 + $0x38] sm:$0xff]
  %v650 = vld [vmem:[%s4 + $0x40] sm:$0xff]
  %v651 = vld [vmem:[%s4 + $0x48] sm:$0xff]
  %v652 = vld [vmem:[%s4 + $0x50] sm:$0xff]
  %v653 = vld [vmem:[%s4 + $0x58] sm:$0xff]
  %v654 = vld [vmem:[%s4 + $0x60] sm:$0xff]
  %v655 = vld [vmem:[%s4 + $0x68] sm:$0xff]
  %v656 = vld [vmem:[%s4 + $0x70] sm:$0xff]
  %v657 = vld [vmem:[%s4 + $0x78] sm:$0xff]
  %v658 = vld [vmem:[%s4 + $0x80] sm:$0xff]
  %v659 = vld [vmem:[%s4 + $0x88] sm:$0xff]
  %v660 = vld [vmem:[%s4 + $0x90] sm:$0xff]
  %v661 = vld [vmem:[%s4 + $0x98] sm:$0xff]
  %v662 = vld [vmem:[%s4 + $0xa0] sm:$0xff]
  %v663 = vld [vmem:[%s4 + $0xa8] sm:$0xff]
  %v664 = vld [vmem:[%s4 + $0xb0] sm:$0xff]
  %v665 = vld [vmem:[%s4 + $0xb8] sm:$0xff]
  %v666 = vld [vmem:[%s4 + $0xc0] sm:$0xff]
  %v667 = vld [vmem:[%s4 + $0xc8] sm:$0xff]
  %v668 = vld [vmem:[%s4 + $0xd0] sm:$0xff]
  %v669 = vld [vmem:[%s4 + $0xd8] sm:$0xff]
  %v670 = vld [vmem:[%s4 + $0xe0] sm:$0xff]
  %v671 = vld [vmem:[%s4 + $0xe8] sm:$0xff]
  %v672 = vld [vmem:[%s4 + $0xf0] sm:$0xff]
  %v673 = vld [vmem:[%s4 + $0xf8] sm:$0xff]
  %v674 = vld [vmem:[%s4 + $0x100] sm:$0xff]
  %v675 = vld [vmem:[%s4 + $0x108] sm:$0xff]
  %v676 = vld [vmem:[%s4 + $0x110] sm:$0xff]
  %v677 = vld [vmem:[%s4 + $0x118] sm:$0xff]
  %v678 = vld [vmem:[%s4 + $0x120] sm:$0xff]
  %v679 = vld [vmem:[%s4 + $0x128] sm:$0xff]
  %v680 = vld [vmem:[%s4 + $0x130] sm:$0xff]
  %v681 = vld [vmem:[%s4 + $0x138] sm:$0xff]
  %v682 = vld [vmem:[%s4 + $0x140] sm:$0xff]
  %v683 = vld [vmem:[%s4 + $0x148] sm:$0xff]
  %v684 = vld [vmem:[%s4 + $0x150] sm:$0xff]
  %v685 = vld [vmem:[%s4 + $0x158] sm:$0xff]
  %v686 = vld [vmem:[%s4 + $0x160] sm:$0xff]
  %v687 = vld [vmem:[%s4 + $0x168] sm:$0xff]
  %v688 = vld [vmem:[%s4 + $0x170] sm:$0xff]
  %v689 = vld [vmem:[%s4 + $0x178] sm:$0xff]
  %v690 = vld [vmem:[%s4 + $0x180] sm:$0xff]
  %v691 = vld [vmem:[%s4 + $0x188] sm:$0xff]
  %v692 = vld [vmem:[%s4 + $0x190] sm:$0xff]
  %v693 = vld [vmem:[%s4 + $0x198] sm:$0xff]
  %v694 = vld [vmem:[%s4 + $0x1a0] sm:$0xff]
  %v695 = vld [vmem:[%s4 + $0x1a8] sm:$0xff]
  %v696 = vld [vmem:[%s4 + $0x1b0] sm:$0xff]
  %v697 = vld [vmem:[%s4 + $0x1b8] sm:$0xff]
  %v698 = vld [vmem:[%s4 + $0x1c0] sm:$0xff]
  %v699 = vld [vmem:[%s4 + $0x1c8] sm:$0xff]
  %v700 = vld [vmem:[%s4 + $0x1d0] sm:$0xff]
  %v701 = vld [vmem:[%s4 + $0x1d8] sm:$0xff]
  %v702 = vld [vmem:[%s4 + $0x1e0] sm:$0xff]
  %v703 = vld [vmem:[%s4 + $0x1e8] sm:$0xff]
  %v704 = vld [vmem:[%s4 + $0x1f0] sm:$0xff]
  %v705 = vld [vmem:[%s4 + $0x1f8] sm:$0xff]
  %v706 = vld [vmem:[%s4 + $0x200] sm:$0xff]
  %v707 = vld [vmem:[%s4 + $0x208] sm:$0xff]
  %v708 = vld [vmem:[%s4 + $0x210] sm:$0xff]
  %v709 = vld [vmem:[%s4 + $0x218] sm:$0xff]
  %v710 = vld [vmem:[%s4 + $0x220] sm:$0xff]
  %v711 = vld [vmem:[%s4 + $0x228] sm:$0xff]
  %v712 = vld [vmem:[%s4 + $0x230] sm:$0xff]
  %v713 = vld [vmem:[%s4 + $0x238] sm:$0xff]
  %v714 = vld [vmem:[%s4 + $0x240] sm:$0xff]
  %v715 = vld [vmem:[%s4 + $0x248] sm:$0xff]
  %v716 = vld [vmem:[%s4 + $0x250] sm:$0xff]
  %v717 = vld [vmem:[%s4 + $0x258] sm:$0xff]
  %v718 = vld [vmem:[%s4 + $0x260] sm:$0xff]
  %v719 = vld [vmem:[%s4 + $0x268] sm:$0xff]
  %v720 = vld [vmem:[%s4 + $0x270] sm:$0xff]
  %v721 = vld [vmem:[%s4 + $0x278] sm:$0xff]
  %v722 = vld [vmem:[%s4 + $0x280] sm:$0xff]
  %v723 = vld [vmem:[%s4 + $0x288] sm:$0xff]
  %v724 = vld [vmem:[%s4 + $0x290] sm:$0xff]
  %v725 = vld [vmem:[%s4 + $0x298] sm:$0xff]
  %v726 = vld [vmem:[%s4 + $0x2a0] sm:$0xff]
  %v727 = vld [vmem:[%s4 + $0x2a8] sm:$0xff]
  %v728 = vld [vmem:[%s4 + $0x2b0] sm:$0xff]
  %v729 = vld [vmem:[%s4 + $0x2b8] sm:$0xff]
  %v730 = vld [vmem:[%s4 + $0x2c0] sm:$0xff]
  %v731 = vld [vmem:[%s4 + $0x2c8] sm:$0xff]
  %v732 = vld [vmem:[%s4 + $0x2d0] sm:$0xff]
  %v733 = vld [vmem:[%s4 + $0x2d8] sm:$0xff]
  %v734 = vld [vmem:[%s4 + $0x2e0] sm:$0xff]
  %v735 = vld [vmem:[%s4 + $0x2e8] sm:$0xff]
  %v736 = vld [vmem:[%s4 + $0x2f0] sm:$0xff]
  %v737 = vld [vmem:[%s4 + $0x2f8] sm:$0xff]
  %v738 = vld [vmem:[%s5] sm:$0x3]
  %v740 = vlaneseq
  %v741 = vshrl.u32 %v740, 7
  %v742 = vsub.s32 0, %v741
  %v743 = vrot.slane %v738, %v742
  %v744 = vlaneseq
  %v745 = vshrl.u32 %v744, 7
  %v746 = vsub.s32 1, %v745
  %v747 = vrot.slane %v738, %v746
  %v846 = vunpack.c.l.b16 %v642
  %v847 = vunpack.c.h.b16 %v642
  %v848 = vunpack.c.l.b16 %v643
  %v849 = vunpack.c.h.b16 %v643
  %v850 = vunpack.c.l.b16 %v644
  %v851 = vunpack.c.h.b16 %v644
  %v852 = vunpack.c.l.b16 %v645
  %v853 = vunpack.c.h.b16 %v645
  %v854 = vunpack.c.l.b16 %v646
  %v855 = vunpack.c.h.b16 %v646
  %v856 = vunpack.c.l.b16 %v647
  %v857 = vunpack.c.h.b16 %v647
  %v858 = vunpack.c.l.b16 %v648
  %v859 = vunpack.c.h.b16 %v648
  %v860 = vunpack.c.l.b16 %v649
  %v861 = vunpack.c.h.b16 %v649
  %v862 = vunpack.c.l.b16 %v650
  %v863 = vunpack.c.h.b16 %v650
  %v864 = vunpack.c.l.b16 %v651
  %v865 = vunpack.c.h.b16 %v651
  %v866 = vunpack.c.l.b16 %v652
  %v867 = vunpack.c.h.b16 %v652
  %v868 = vunpack.c.l.b16 %v653
  %v869 = vunpack.c.h.b16 %v653
  %v870 = vunpack.c.l.b16 %v654
  %v871 = vunpack.c.h.b16 %v654
  %v872 = vunpack.c.l.b16 %v655
  %v873 = vunpack.c.h.b16 %v655
  %v874 = vunpack.c.l.b16 %v656
  %v875 = vunpack.c.h.b16 %v656
  %v876 = vunpack.c.l.b16 %v657
  %v877 = vunpack.c.h.b16 %v657
  %v878 = vunpack.c.l.b16 %v658
  %v879 = vunpack.c.h.b16 %v658
  %v880 = vunpack.c.l.b16 %v659
  %v881 = vunpack.c.h.b16 %v659
  %v882 = vunpack.c.l.b16 %v660
  %v883 = vunpack.c.h.b16 %v660
  %v884 = vunpack.c.l.b16 %v661
  %v885 = vunpack.c.h.b16 %v661
  %v886 = vunpack.c.l.b16 %v662
  %v887 = vunpack.c.h.b16 %v662
  %v888 = vunpack.c.l.b16 %v663
  %v889 = vunpack.c.h.b16 %v663
  %v890 = vunpack.c.l.b16 %v664
  %v891 = vunpack.c.h.b16 %v664
  %v892 = vunpack.c.l.b16 %v665
  %v893 = vunpack.c.h.b16 %v665
  %v894 = vunpack.c.l.b16 %v666
  %v895 = vunpack.c.h.b16 %v666
  %v896 = vunpack.c.l.b16 %v667
  %v897 = vunpack.c.h.b16 %v667
  %v898 = vunpack.c.l.b16 %v668
  %v899 = vunpack.c.h.b16 %v668
  %v900 = vunpack.c.l.b16 %v669
  %v901 = vunpack.c.h.b16 %v669
  %v902 = vunpack.c.l.b16 %v670
  %v903 = vunpack.c.h.b16 %v670
  %v904 = vunpack.c.l.b16 %v671
  %v905 = vunpack.c.h.b16 %v671
  %v906 = vunpack.c.l.b16 %v672
  %v907 = vunpack.c.h.b16 %v672
  %v908 = vunpack.c.l.b16 %v673
  %v909 = vunpack.c.h.b16 %v673
  %v910 = vunpack.c.l.b16 %v674
  %v911 = vunpack.c.h.b16 %v674
  %v912 = vunpack.c.l.b16 %v675
  %v913 = vunpack.c.h.b16 %v675
  %v914 = vunpack.c.l.b16 %v676
  %v915 = vunpack.c.h.b16 %v676
  %v916 = vunpack.c.l.b16 %v677
  %v917 = vunpack.c.h.b16 %v677
  %v918 = vunpack.c.l.b16 %v678
  %v919 = vunpack.c.h.b16 %v678
  %v920 = vunpack.c.l.b16 %v679
  %v921 = vunpack.c.h.b16 %v679
  %v922 = vunpack.c.l.b16 %v680
  %v923 = vunpack.c.h.b16 %v680
  %v924 = vunpack.c.l.b16 %v681
  %v925 = vunpack.c.h.b16 %v681
  %v926 = vunpack.c.l.b16 %v682
  %v927 = vunpack.c.h.b16 %v682
  %v928 = vunpack.c.l.b16 %v683
  %v929 = vunpack.c.h.b16 %v683
  %v930 = vunpack.c.l.b16 %v684
  %v931 = vunpack.c.h.b16 %v684
  %v932 = vunpack.c.l.b16 %v685
  %v933 = vunpack.c.h.b16 %v685
  %v934 = vunpack.c.l.b16 %v686
  %v935 = vunpack.c.h.b16 %v686
  %v936 = vunpack.c.l.b16 %v687
  %v937 = vunpack.c.h.b16 %v687
  %v938 = vunpack.c.l.b16 %v688
  %v939 = vunpack.c.h.b16 %v688
  %v940 = vunpack.c.l.b16 %v689
  %v941 = vunpack.c.h.b16 %v689
  %v942 = vunpack.c.l.b16 %v690
  %v943 = vunpack.c.h.b16 %v690
  %v944 = vunpack.c.l.b16 %v691
  %v945 = vunpack.c.h.b16 %v691
  %v946 = vunpack.c.l.b16 %v692
  %v947 = vunpack.c.h.b16 %v692
  %v948 = vunpack.c.l.b16 %v693
  %v949 = vunpack.c.h.b16 %v693
  %v950 = vunpack.c.l.b16 %v694
  %v951 = vunpack.c.h.b16 %v694
  %v952 = vunpack.c.l.b16 %v695
  %v953 = vunpack.c.h.b16 %v695
  %v954 = vunpack.c.l.b16 %v696
  %v955 = vunpack.c.h.b16 %v696
  %v956 = vunpack.c.l.b16 %v697
  %v957 = vunpack.c.h.b16 %v697
  %v958 = vunpack.c.l.b16 %v698
  %v959 = vunpack.c.h.b16 %v698
  %v960 = vunpack.c.l.b16 %v699
  %v961 = vunpack.c.h.b16 %v699
  %v962 = vunpack.c.l.b16 %v700
  %v963 = vunpack.c.h.b16 %v700
  %v964 = vunpack.c.l.b16 %v701
  %v965 = vunpack.c.h.b16 %v701
  %v966 = vunpack.c.l.b16 %v702
  %v967 = vunpack.c.h.b16 %v702
  %v968 = vunpack.c.l.b16 %v703
  %v969 = vunpack.c.h.b16 %v703
  %v970 = vunpack.c.l.b16 %v704
  %v971 = vunpack.c.h.b16 %v704
  %v972 = vunpack.c.l.b16 %v705
  %v973 = vunpack.c.h.b16 %v705
  %v974 = vunpack.c.l.b16 %v706
  %v975 = vunpack.c.h.b16 %v706
  %v976 = vunpack.c.l.b16 %v707
  %v977 = vunpack.c.h.b16 %v707
  %v978 = vunpack.c.l.b16 %v708
  %v979 = vunpack.c.h.b16 %v708
  %v980 = vunpack.c.l.b16 %v709
  %v981 = vunpack.c.h.b16 %v709
  %v982 = vunpack.c.l.b16 %v710
  %v983 = vunpack.c.h.b16 %v710
  %v984 = vunpack.c.l.b16 %v711
  %v985 = vunpack.c.h.b16 %v711
  %v986 = vunpack.c.l.b16 %v712
  %v987 = vunpack.c.h.b16 %v712
  %v988 = vunpack.c.l.b16 %v713
  %v989 = vunpack.c.h.b16 %v713
  %v990 = vunpack.c.l.b16 %v714
  %v991 = vunpack.c.h.b16 %v714
  %v992 = vunpack.c.l.b16 %v715
  %v993 = vunpack.c.h.b16 %v715
  %v994 = vunpack.c.l.b16 %v716
  %v995 = vunpack.c.h.b16 %v716
  %v996 = vunpack.c.l.b16 %v717
  %v997 = vunpack.c.h.b16 %v717
  %v998 = vunpack.c.l.b16 %v718
  %v999 = vunpack.c.h.b16 %v718
  %v1000 = vunpack.c.l.b16 %v719
  %v1001 = vunpack.c.h.b16 %v719
  %v1002 = vunpack.c.l.b16 %v720
  %v1003 = vunpack.c.h.b16 %v720
  %v1004 = vunpack.c.l.b16 %v721
  %v1005 = vunpack.c.h.b16 %v721
  %v1006 = vunpack.c.l.b16 %v722
  %v1007 = vunpack.c.h.b16 %v722
  %v1008 = vunpack.c.l.b16 %v723
  %v1009 = vunpack.c.h.b16 %v723
  %v1010 = vunpack.c.l.b16 %v724
  %v1011 = vunpack.c.h.b16 %v724
  %v1012 = vunpack.c.l.b16 %v725
  %v1013 = vunpack.c.h.b16 %v725
  %v1014 = vunpack.c.l.b16 %v726
  %v1015 = vunpack.c.h.b16 %v726
  %v1016 = vunpack.c.l.b16 %v727
  %v1017 = vunpack.c.h.b16 %v727
  %v1018 = vunpack.c.l.b16 %v728
  %v1019 = vunpack.c.h.b16 %v728
  %v1020 = vunpack.c.l.b16 %v729
  %v1021 = vunpack.c.h.b16 %v729
  %v1022 = vunpack.c.l.b16 %v730
  %v1023 = vunpack.c.h.b16 %v730
  %v1024 = vunpack.c.l.b16 %v731
  %v1025 = vunpack.c.h.b16 %v731
  %v1026 = vunpack.c.l.b16 %v732
  %v1027 = vunpack.c.h.b16 %v732
  %v1028 = vunpack.c.l.b16 %v733
  %v1029 = vunpack.c.h.b16 %v733
  %v1030 = vunpack.c.l.b16 %v734
  %v1031 = vunpack.c.h.b16 %v734
  %v1032 = vunpack.c.l.b16 %v735
  %v1033 = vunpack.c.h.b16 %v735
  %v1034 = vunpack.c.l.b16 %v736
  %v1035 = vunpack.c.h.b16 %v736
  %v1036 = vunpack.c.l.b16 %v737
  %v1037 = vunpack.c.h.b16 %v737
  %v1038 = vpack.c.b16 %v848, %v846
  %v1039 = vpack.c.b16 %v849, %v847
  %v1040 = vpack.c.b16 %v852, %v850
  %v1041 = vpack.c.b16 %v853, %v851
  %v1042 = vpack.c.b16 %v856, %v854
  %v1043 = vpack.c.b16 %v857, %v855
  %v1044 = vpack.c.b16 %v860, %v858
  %v1045 = vpack.c.b16 %v861, %v859
  %v1046 = vpack.c.b16 %v864, %v862
  %v1047 = vpack.c.b16 %v865, %v863
  %v1048 = vpack.c.b16 %v868, %v866
  %v1049 = vpack.c.b16 %v869, %v867
  %v1050 = vpack.c.b16 %v872, %v870
  %v1051 = vpack.c.b16 %v873, %v871
  %v1052 = vpack.c.b16 %v876, %v874
  %v1053 = vpack.c.b16 %v877, %v875
  %v1054 = vpack.c.b16 %v880, %v878
  %v1055 = vpack.c.b16 %v881, %v879
  %v1056 = vpack.c.b16 %v884, %v882
  %v1057 = vpack.c.b16 %v885, %v883
  %v1058 = vpack.c.b16 %v888, %v886
  %v1059 = vpack.c.b16 %v889, %v887
  %v1060 = vpack.c.b16 %v892, %v890
  %v1061 = vpack.c.b16 %v893, %v891
  %v1062 = vpack.c.b16 %v896, %v894
  %v1063 = vpack.c.b16 %v897, %v895
  %v1064 = vpack.c.b16 %v900, %v898
  %v1065 = vpack.c.b16 %v901, %v899
  %v1066 = vpack.c.b16 %v904, %v902
  %v1067 = vpack.c.b16 %v905, %v903
  %v1068 = vpack.c.b16 %v908, %v906
  %v1069 = vpack.c.b16 %v909, %v907
  %v1070 = vpack.c.b16 %v912, %v910
  %v1071 = vpack.c.b16 %v913, %v911
  %v1072 = vpack.c.b16 %v916, %v914
  %v1073 = vpack.c.b16 %v917, %v915
  %v1074 = vpack.c.b16 %v920, %v918
  %v1075 = vpack.c.b16 %v921, %v919
  %v1076 = vpack.c.b16 %v924, %v922
  %v1077 = vpack.c.b16 %v925, %v923
  %v1078 = vpack.c.b16 %v928, %v926
  %v1079 = vpack.c.b16 %v929, %v927
  %v1080 = vpack.c.b16 %v932, %v930
  %v1081 = vpack.c.b16 %v933, %v931
  %v1082 = vpack.c.b16 %v936, %v934
  %v1083 = vpack.c.b16 %v937, %v935
  %v1084 = vpack.c.b16 %v940, %v938
  %v1085 = vpack.c.b16 %v941, %v939
  %v1086 = vpack.c.b16 %v944, %v942
  %v1087 = vpack.c.b16 %v945, %v943
  %v1088 = vpack.c.b16 %v948, %v946
  %v1089 = vpack.c.b16 %v949, %v947
  %v1090 = vpack.c.b16 %v952, %v950
  %v1091 = vpack.c.b16 %v953, %v951
  %v1092 = vpack.c.b16 %v956, %v954
  %v1093 = vpack.c.b16 %v957, %v955
  %v1094 = vpack.c.b16 %v960, %v958
  %v1095 = vpack.c.b16 %v961, %v959
  %v1096 = vpack.c.b16 %v964, %v962
  %v1097 = vpack.c.b16 %v965, %v963
  %v1098 = vpack.c.b16 %v968, %v966
  %v1099 = vpack.c.b16 %v969, %v967
  %v1100 = vpack.c.b16 %v972, %v970
  %v1101 = vpack.c.b16 %v973, %v971
  %v1102 = vpack.c.b16 %v976, %v974
  %v1103 = vpack.c.b16 %v977, %v975
  %v1104 = vpack.c.b16 %v980, %v978
  %v1105 = vpack.c.b16 %v981, %v979
  %v1106 = vpack.c.b16 %v984, %v982
  %v1107 = vpack.c.b16 %v985, %v983
  %v1108 = vpack.c.b16 %v988, %v986
  %v1109 = vpack.c.b16 %v989, %v987
  %v1110 = vpack.c.b16 %v992, %v990
  %v1111 = vpack.c.b16 %v993, %v991
  %v1112 = vpack.c.b16 %v996, %v994
  %v1113 = vpack.c.b16 %v997, %v995
  %v1114 = vpack.c.b16 %v1000, %v998
  %v1115 = vpack.c.b16 %v1001, %v999
  %v1116 = vpack.c.b16 %v1004, %v1002
  %v1117 = vpack.c.b16 %v1005, %v1003
  %v1118 = vpack.c.b16 %v1008, %v1006
  %v1119 = vpack.c.b16 %v1009, %v1007
  %v1120 = vpack.c.b16 %v1012, %v1010
  %v1121 = vpack.c.b16 %v1013, %v1011
  %v1122 = vpack.c.b16 %v1016, %v1014
  %v1123 = vpack.c.b16 %v1017, %v1015
  %v1124 = vpack.c.b16 %v1020, %v1018
  %v1125 = vpack.c.b16 %v1021, %v1019
  %v1126 = vpack.c.b16 %v1024, %v1022
  %v1127 = vpack.c.b16 %v1025, %v1023
  %v1128 = vpack.c.b16 %v1028, %v1026
  %v1129 = vpack.c.b16 %v1029, %v1027
  %v1130 = vpack.c.b16 %v1032, %v1030
  %v1131 = vpack.c.b16 %v1033, %v1031
  %v1132 = vpack.c.b16 %v1036, %v1034
  %v1133 = vpack.c.b16 %v1037, %v1035
  %1230 = vmatprep.subr.bf16.mxu0 %v1039
  %1231 = vmatpush1.bf16.msra.mxu0 %v1038
  %1232 = vmatprep.subr.bf16.mxu0 %v1041
  %1233 = vmatpush1.bf16.msra.mxu0 %v1040
  %1234 = vmatprep.subr.bf16.mxu0 %v1043
  %1235 = vmatpush1.bf16.msra.mxu0 %v1042
  %1236 = vmatprep.subr.bf16.mxu0 %v1045
  %1237 = vmatpush1.bf16.msra.mxu0 %v1044
  %1238 = vmatprep.subr.bf16.mxu0 %v1047
  %1239 = vmatpush1.bf16.msra.mxu0 %v1046
  %1240 = vmatprep.subr.bf16.mxu0 %v1049
  %1241 = vmatpush1.bf16.msra.mxu0 %v1048
  %1242 = vmatprep.subr.bf16.mxu0 %v1051
  %1243 = vmatpush1.bf16.msra.mxu0 %v1050
  %1244 = vmatprep.subr.bf16.mxu0 %v1053
  %1245 = vmatpush1.bf16.msra.mxu0 %v1052
  %1246 = vmatprep.subr.bf16.mxu0 %v1055
  %1247 = vmatpush1.bf16.msra.mxu0 %v1054
  %1248 = vmatprep.subr.bf16.mxu0 %v1057
  %1249 = vmatpush1.bf16.msra.mxu0 %v1056
  %1250 = vmatprep.subr.bf16.mxu0 %v1059
  %1251 = vmatpush1.bf16.msra.mxu0 %v1058
  %1252 = vmatprep.subr.bf16.mxu0 %v1061
  %1253 = vmatpush1.bf16.msra.mxu0 %v1060
  %1254 = vmatprep.subr.bf16.mxu0 %v1063
  %1255 = vmatpush1.bf16.msra.mxu0 %v1062
  %1256 = vmatprep.subr.bf16.mxu0 %v1065
  %1257 = vmatpush1.bf16.msra.mxu0 %v1064
  %1258 = vmatprep.subr.bf16.mxu0 %v1067
  %1259 = vmatpush1.bf16.msra.mxu0 %v1066
  %1260 = vmatprep.subr.bf16.mxu0 %v1069
  %1261 = vmatpush1.bf16.msra.mxu0 %v1068
  %1262 = vmatprep.mubr.bf16.mxu0 %v637
  %1263 = vmatmul.mubr.bf16.gmra.mrb[0].mxu0 %v636
  %v1264 = vpop.f32.mrb[0].mxu0
  %v1265 = vadd.f32 %v743, %v1264
  %v1266 = vpop.f32.mrb[0].mxu0
  %v1267 = vadd.f32 %v747, %v1266
  %v1268 = vpop.f32.mrb[0].mxu0
  %v1269 = vadd.f32 %v743, %v1268
  %v1270 = vpop.f32.mrb[0].mxu0
  %v1271 = vadd.f32 %v747, %v1270
  %1272 = vdwg.mxu0
  %1273 = vmatprep.subr.bf16.mxu0 %v1071
  %1274 = vmatpush1.bf16.msra.mxu0 %v1070
  %1275 = vmatprep.subr.bf16.mxu0 %v1073
  %1276 = vmatpush1.bf16.msra.mxu0 %v1072
  %1277 = vmatprep.subr.bf16.mxu0 %v1075
  %1278 = vmatpush1.bf16.msra.mxu0 %v1074
  %1279 = vmatprep.subr.bf16.mxu0 %v1077
  %1280 = vmatpush1.bf16.msra.mxu0 %v1076
  %1281 = vmatprep.subr.bf16.mxu0 %v1079
  %1282 = vmatpush1.bf16.msra.mxu0 %v1078
  %1283 = vmatprep.subr.bf16.mxu0 %v1081
  %1284 = vmatpush1.bf16.msra.mxu0 %v1080
  %1285 = vmatprep.subr.bf16.mxu0 %v1083
  %1286 = vmatpush1.bf16.msra.mxu0 %v1082
  %1287 = vmatprep.subr.bf16.mxu0 %v1085
  %1288 = vmatpush1.bf16.msra.mxu0 %v1084
  %1289 = vmatprep.subr.bf16.mxu0 %v1087
  %1290 = vmatpush1.bf16.msra.mxu0 %v1086
  %1291 = vmatprep.subr.bf16.mxu0 %v1089
  %1292 = vmatpush1.bf16.msra.mxu0 %v1088
  %1293 = vmatprep.subr.bf16.mxu0 %v1091
  %1294 = vmatpush1.bf16.msra.mxu0 %v1090
  %1295 = vmatprep.subr.bf16.mxu0 %v1093
  %1296 = vmatpush1.bf16.msra.mxu0 %v1092
  %1297 = vmatprep.subr.bf16.mxu0 %v1095
  %1298 = vmatpush1.bf16.msra.mxu0 %v1094
  %1299 = vmatprep.subr.bf16.mxu0 %v1097
  %1300 = vmatpush1.bf16.msra.mxu0 %v1096
  %1301 = vmatprep.subr.bf16.mxu0 %v1099
  %1302 = vmatpush1.bf16.msra.mxu0 %v1098
  %1303 = vmatprep.subr.bf16.mxu0 %v1101
  %1304 = vmatpush1.bf16.msra.mxu0 %v1100
  %1305 = vmatprep.mubr.bf16.mxu0 %v639
  %1306 = vmatmul.mubr.bf16.gmra.mrb[0].mxu0 %v638
  %v1307 = vpop.f32.mrb[0].mxu0
  %v1308 = vadd.f32 %v1265, %v1307
  %v1309 = vpop.f32.mrb[0].mxu0
  %v1310 = vadd.f32 %v1267, %v1309
  %v1311 = vpop.f32.mrb[0].mxu0
  %v1312 = vadd.f32 %v1269, %v1311
  %v1313 = vpop.f32.mrb[0].mxu0
  %v1314 = vadd.f32 %v1271, %v1313
  %1315 = vdwg.mxu0
  %1316 = vmatprep.subr.bf16.mxu0 %v1103
  %1317 = vmatpush1.bf16.msra.mxu0 %v1102
  %1318 = vmatprep.subr.bf16.mxu0 %v1105
  %1319 = vmatpush1.bf16.msra.mxu0 %v1104
  %1320 = vmatprep.subr.bf16.mxu0 %v1107
  %1321 = vmatpush1.bf16.msra.mxu0 %v1106
  %1322 = vmatprep.subr.bf16.mxu0 %v1109
  %1323 = vmatpush1.bf16.msra.mxu0 %v1108
  %1324 = vmatprep.subr.bf16.mxu0 %v1111
  %1325 = vmatpush1.bf16.msra.mxu0 %v1110
  %1326 = vmatprep.subr.bf16.mxu0 %v1113
  %1327 = vmatpush1.bf16.msra.mxu0 %v1112
  %1328 = vmatprep.subr.bf16.mxu0 %v1115
  %1329 = vmatpush1.bf16.msra.mxu0 %v1114
  %1330 = vmatprep.subr.bf16.mxu0 %v1117
  %1331 = vmatpush1.bf16.msra.mxu0 %v1116
  %1332 = vmatprep.subr.bf16.mxu0 %v1119
  %1333 = vmatpush1.bf16.msra.mxu0 %v1118
  %1334 = vmatprep.subr.bf16.mxu0 %v1121
  %1335 = vmatpush1.bf16.msra.mxu0 %v1120
  %1336 = vmatprep.subr.bf16.mxu0 %v1123
  %1337 = vmatpush1.bf16.msra.mxu0 %v1122
  %1338 = vmatprep.subr.bf16.mxu0 %v1125
  %1339 = vmatpush1.bf16.msra.mxu0 %v1124
  %1340 = vmatprep.subr.bf16.mxu0 %v1127
  %1341 = vmatpush1.bf16.msra.mxu0 %v1126
  %1342 = vmatprep.subr.bf16.mxu0 %v1129
  %1343 = vmatpush1.bf16.msra.mxu0 %v1128
  %1344 = vmatprep.subr.bf16.mxu0 %v1131
  %1345 = vmatpush1.bf16.msra.mxu0 %v1130
  %1346 = vmatprep.subr.bf16.mxu0 %v1133
  %1347 = vmatpush1.bf16.msra.mxu0 %v1132
  %1348 = vmatprep.mubr.bf16.mxu0 %v641
  %1349 = vmatmul.mubr.bf16.gmra.mrb[0].mxu0 %v640
  %v1350 = vpop.f32.mrb[0].mxu0
  %v1351 = vadd.f32 %v1308, %v1350
  %v1352 = vpop.f32.mrb[0].mxu0
  %v1353 = vadd.f32 %v1310, %v1352
  %v1354 = vpop.f32.mrb[0].mxu0
  %v1355 = vadd.f32 %v1312, %v1354
  %v1356 = vpop.f32.mrb[0].mxu0
  %v1357 = vadd.f32 %v1314, %v1356
  %1358 = vdwg.mxu0
  %vm1359 = vcmp.gt.f32.partialorder %v1351, 0.0
  %vm1360 = vcmp.gt.f32.partialorder %v1353, 0.0
  %vm1361 = vcmp.gt.f32.partialorder %v1355, 0.0
  %vm1362 = vcmp.gt.f32.partialorder %v1357, 0.0
  %v1363 = vmul.f32 %v1351, 0.01
  %v1364 = vmul.f32 %v1353, 0.01
  %v1365 = vmul.f32 %v1355, 0.01
  %v1366 = vmul.f32 %v1357, 0.01
  %v1367 = vsel %vm1359, %v1351, %v1363
  %v1368 = vsel %vm1360, %v1353, %v1364
  %v1369 = vsel %vm1361, %v1355, %v1365
  %v1370 = vsel %vm1362, %v1357, %v1366
  %v1371 = vrot.slane %v1367, 7
  %v1372 = vrot.slane %v1368, 7
  %v1373 = vrot.slane %v1369, 7
  %v1374 = vrot.slane %v1370, 7
  %v1375 = vsel %vm191, %v1371, %v1373
  %v1376 = vsel %vm191, %v1372, %v1374
  %v1377 = vsel %vm191, %v1373, %v1371
  %v1378 = vsel %vm191, %v1374, %v1372
  %v1379 = vsel %vm196, 0.0, %v1377
  %v1380 = vsel %vm196, 0.0, %v1378
  %v1381 = vsel %vm197, 0.0, %v1375
  %v1382 = vsel %vm197, 0.0, %v1376
  %v1383 = vrot.slane %v1367, 1
  %v1384 = vrot.slane %v1368, 1
  %v1385 = vrot.slane %v1369, 1
  %v1386 = vrot.slane %v1370, 1
  %v1387 = vsel %vm202, %v1383, %v1385
  %v1388 = vsel %vm202, %v1384, %v1386
  %v1389 = vsel %vm202, %v1385, %v1383
  %v1390 = vsel %vm202, %v1386, %v1384
  %v1391 = vsel %vm207, 0.0, %v1387
  %v1392 = vsel %vm207, 0.0, %v1388
  %v1393 = vsel %vm208, 0.0, %v1389
  %v1394 = vsel %vm208, 0.0, %v1390
  %v1395 = vpack.c.bf16 %v1381, %v1379
  %v1396 = vpack.c.bf16 %v1382, %v1380
  %v1397 = vpack.c.bf16 %v1369, %v1367
  %v1398 = vpack.c.bf16 %v1370, %v1368
  %v1399 = vpack.c.bf16 %v1393, %v1391
  %v1400 = vpack.c.bf16 %v1394, %v1392
  %v1401 = vld [vmem:[%s6] sm:$0xff]
  %v1402 = vld [vmem:[%s6 + $0x8] sm:$0xff]
  %v1403 = vld [vmem:[%s6 + $0x10] sm:$0xff]
  %v1404 = vld [vmem:[%s6 + $0x18] sm:$0xff]
  %v1405 = vld [vmem:[%s6 + $0x20] sm:$0xff]
  %v1406 = vld [vmem:[%s6 + $0x28] sm:$0xff]
  %v1407 = vld [vmem:[%s6 + $0x30] sm:$0xff]
  %v1408 = vld [vmem:[%s6 + $0x38] sm:$0xff]
  %v1409 = vld [vmem:[%s6 + $0x40] sm:$0xff]
  %v1410 = vld [vmem:[%s6 + $0x48] sm:$0xff]
  %v1411 = vld [vmem:[%s6 + $0x50] sm:$0xff]
  %v1412 = vld [vmem:[%s6 + $0x58] sm:$0xff]
  %v1413 = vld [vmem:[%s6 + $0x60] sm:$0xff]
  %v1414 = vld [vmem:[%s6 + $0x68] sm:$0xff]
  %v1415 = vld [vmem:[%s6 + $0x70] sm:$0xff]
  %v1416 = vld [vmem:[%s6 + $0x78] sm:$0xff]
  %v1417 = vld [vmem:[%s6 + $0x80] sm:$0xff]
  %v1418 = vld [vmem:[%s6 + $0x88] sm:$0xff]
  %v1419 = vld [vmem:[%s6 + $0x90] sm:$0xff]
  %v1420 = vld [vmem:[%s6 + $0x98] sm:$0xff]
  %v1421 = vld [vmem:[%s6 + $0xa0] sm:$0xff]
  %v1422 = vld [vmem:[%s6 + $0xa8] sm:$0xff]
  %v1423 = vld [vmem:[%s6 + $0xb0] sm:$0xff]
  %v1424 = vld [vmem:[%s6 + $0xb8] sm:$0xff]
  %v1425 = vld [vmem:[%s6 + $0xc0] sm:$0xff]
  %v1426 = vld [vmem:[%s6 + $0xc8] sm:$0xff]
  %v1427 = vld [vmem:[%s6 + $0xd0] sm:$0xff]
  %v1428 = vld [vmem:[%s6 + $0xd8] sm:$0xff]
  %v1429 = vld [vmem:[%s6 + $0xe0] sm:$0xff]
  %v1430 = vld [vmem:[%s6 + $0xe8] sm:$0xff]
  %v1431 = vld [vmem:[%s6 + $0xf0] sm:$0xff]
  %v1432 = vld [vmem:[%s6 + $0xf8] sm:$0xff]
  %v1433 = vld [vmem:[%s6 + $0x100] sm:$0xff]
  %v1434 = vld [vmem:[%s6 + $0x108] sm:$0xff]
  %v1435 = vld [vmem:[%s6 + $0x110] sm:$0xff]
  %v1436 = vld [vmem:[%s6 + $0x118] sm:$0xff]
  %v1437 = vld [vmem:[%s6 + $0x120] sm:$0xff]
  %v1438 = vld [vmem:[%s6 + $0x128] sm:$0xff]
  %v1439 = vld [vmem:[%s6 + $0x130] sm:$0xff]
  %v1440 = vld [vmem:[%s6 + $0x138] sm:$0xff]
  %v1441 = vld [vmem:[%s6 + $0x140] sm:$0xff]
  %v1442 = vld [vmem:[%s6 + $0x148] sm:$0xff]
  %v1443 = vld [vmem:[%s6 + $0x150] sm:$0xff]
  %v1444 = vld [vmem:[%s6 + $0x158] sm:$0xff]
  %v1445 = vld [vmem:[%s6 + $0x160] sm:$0xff]
  %v1446 = vld [vmem:[%s6 + $0x168] sm:$0xff]
  %v1447 = vld [vmem:[%s6 + $0x170] sm:$0xff]
  %v1448 = vld [vmem:[%s6 + $0x178] sm:$0xff]
  %v1449 = vld [vmem:[%s6 + $0x180] sm:$0xff]
  %v1450 = vld [vmem:[%s6 + $0x188] sm:$0xff]
  %v1451 = vld [vmem:[%s6 + $0x190] sm:$0xff]
  %v1452 = vld [vmem:[%s6 + $0x198] sm:$0xff]
  %v1453 = vld [vmem:[%s6 + $0x1a0] sm:$0xff]
  %v1454 = vld [vmem:[%s6 + $0x1a8] sm:$0xff]
  %v1455 = vld [vmem:[%s6 + $0x1b0] sm:$0xff]
  %v1456 = vld [vmem:[%s6 + $0x1b8] sm:$0xff]
  %v1457 = vld [vmem:[%s6 + $0x1c0] sm:$0xff]
  %v1458 = vld [vmem:[%s6 + $0x1c8] sm:$0xff]
  %v1459 = vld [vmem:[%s6 + $0x1d0] sm:$0xff]
  %v1460 = vld [vmem:[%s6 + $0x1d8] sm:$0xff]
  %v1461 = vld [vmem:[%s6 + $0x1e0] sm:$0xff]
  %v1462 = vld [vmem:[%s6 + $0x1e8] sm:$0xff]
  %v1463 = vld [vmem:[%s6 + $0x1f0] sm:$0xff]
  %v1464 = vld [vmem:[%s6 + $0x1f8] sm:$0xff]
  %v1465 = vld [vmem:[%s6 + $0x200] sm:$0xff]
  %v1466 = vld [vmem:[%s6 + $0x208] sm:$0xff]
  %v1467 = vld [vmem:[%s6 + $0x210] sm:$0xff]
  %v1468 = vld [vmem:[%s6 + $0x218] sm:$0xff]
  %v1469 = vld [vmem:[%s6 + $0x220] sm:$0xff]
  %v1470 = vld [vmem:[%s6 + $0x228] sm:$0xff]
  %v1471 = vld [vmem:[%s6 + $0x230] sm:$0xff]
  %v1472 = vld [vmem:[%s6 + $0x238] sm:$0xff]
  %v1473 = vld [vmem:[%s6 + $0x240] sm:$0xff]
  %v1474 = vld [vmem:[%s6 + $0x248] sm:$0xff]
  %v1475 = vld [vmem:[%s6 + $0x250] sm:$0xff]
  %v1476 = vld [vmem:[%s6 + $0x258] sm:$0xff]
  %v1477 = vld [vmem:[%s6 + $0x260] sm:$0xff]
  %v1478 = vld [vmem:[%s6 + $0x268] sm:$0xff]
  %v1479 = vld [vmem:[%s6 + $0x270] sm:$0xff]
  %v1480 = vld [vmem:[%s6 + $0x278] sm:$0xff]
  %v1481 = vld [vmem:[%s6 + $0x280] sm:$0xff]
  %v1482 = vld [vmem:[%s6 + $0x288] sm:$0xff]
  %v1483 = vld [vmem:[%s6 + $0x290] sm:$0xff]
  %v1484 = vld [vmem:[%s6 + $0x298] sm:$0xff]
  %v1485 = vld [vmem:[%s6 + $0x2a0] sm:$0xff]
  %v1486 = vld [vmem:[%s6 + $0x2a8] sm:$0xff]
  %v1487 = vld [vmem:[%s6 + $0x2b0] sm:$0xff]
  %v1488 = vld [vmem:[%s6 + $0x2b8] sm:$0xff]
  %v1489 = vld [vmem:[%s6 + $0x2c0] sm:$0xff]
  %v1490 = vld [vmem:[%s6 + $0x2c8] sm:$0xff]
  %v1491 = vld [vmem:[%s6 + $0x2d0] sm:$0xff]
  %v1492 = vld [vmem:[%s6 + $0x2d8] sm:$0xff]
  %v1493 = vld [vmem:[%s6 + $0x2e0] sm:$0xff]
  %v1494 = vld [vmem:[%s6 + $0x2e8] sm:$0xff]
  %v1495 = vld [vmem:[%s6 + $0x2f0] sm:$0xff]
  %v1496 = vld [vmem:[%s6 + $0x2f8] sm:$0xff]
  %v1497 = vld [vmem:[%s7] sm:$0x3]
  %v1499 = vlaneseq
  %v1500 = vshrl.u32 %v1499, 7
  %v1501 = vsub.s32 0, %v1500
  %v1502 = vrot.slane %v1497, %v1501
  %v1503 = vlaneseq
  %v1504 = vshrl.u32 %v1503, 7
  %v1505 = vsub.s32 1, %v1504
  %v1506 = vrot.slane %v1497, %v1505
  %v1605 = vunpack.c.l.b16 %v1401
  %v1606 = vunpack.c.h.b16 %v1401
  %v1607 = vunpack.c.l.b16 %v1402
  %v1608 = vunpack.c.h.b16 %v1402
  %v1609 = vunpack.c.l.b16 %v1403
  %v1610 = vunpack.c.h.b16 %v1403
  %v1611 = vunpack.c.l.b16 %v1404
  %v1612 = vunpack.c.h.b16 %v1404
  %v1613 = vunpack.c.l.b16 %v1405
  %v1614 = vunpack.c.h.b16 %v1405
  %v1615 = vunpack.c.l.b16 %v1406
  %v1616 = vunpack.c.h.b16 %v1406
  %v1617 = vunpack.c.l.b16 %v1407
  %v1618 = vunpack.c.h.b16 %v1407
  %v1619 = vunpack.c.l.b16 %v1408
  %v1620 = vunpack.c.h.b16 %v1408
  %v1621 = vunpack.c.l.b16 %v1409
  %v1622 = vunpack.c.h.b16 %v1409
  %v1623 = vunpack.c.l.b16 %v1410
  %v1624 = vunpack.c.h.b16 %v1410
  %v1625 = vunpack.c.l.b16 %v1411
  %v1626 = vunpack.c.h.b16 %v1411
  %v1627 = vunpack.c.l.b16 %v1412
  %v1628 = vunpack.c.h.b16 %v1412
  %v1629 = vunpack.c.l.b16 %v1413
  %v1630 = vunpack.c.h.b16 %v1413
  %v1631 = vunpack.c.l.b16 %v1414
  %v1632 = vunpack.c.h.b16 %v1414
  %v1633 = vunpack.c.l.b16 %v1415
  %v1634 = vunpack.c.h.b16 %v1415
  %v1635 = vunpack.c.l.b16 %v1416
  %v1636 = vunpack.c.h.b16 %v1416
  %v1637 = vunpack.c.l.b16 %v1417
  %v1638 = vunpack.c.h.b16 %v1417
  %v1639 = vunpack.c.l.b16 %v1418
  %v1640 = vunpack.c.h.b16 %v1418
  %v1641 = vunpack.c.l.b16 %v1419
  %v1642 = vunpack.c.h.b16 %v1419
  %v1643 = vunpack.c.l.b16 %v1420
  %v1644 = vunpack.c.h.b16 %v1420
  %v1645 = vunpack.c.l.b16 %v1421
  %v1646 = vunpack.c.h.b16 %v1421
  %v1647 = vunpack.c.l.b16 %v1422
  %v1648 = vunpack.c.h.b16 %v1422
  %v1649 = vunpack.c.l.b16 %v1423
  %v1650 = vunpack.c.h.b16 %v1423
  %v1651 = vunpack.c.l.b16 %v1424
  %v1652 = vunpack.c.h.b16 %v1424
  %v1653 = vunpack.c.l.b16 %v1425
  %v1654 = vunpack.c.h.b16 %v1425
  %v1655 = vunpack.c.l.b16 %v1426
  %v1656 = vunpack.c.h.b16 %v1426
  %v1657 = vunpack.c.l.b16 %v1427
  %v1658 = vunpack.c.h.b16 %v1427
  %v1659 = vunpack.c.l.b16 %v1428
  %v1660 = vunpack.c.h.b16 %v1428
  %v1661 = vunpack.c.l.b16 %v1429
  %v1662 = vunpack.c.h.b16 %v1429
  %v1663 = vunpack.c.l.b16 %v1430
  %v1664 = vunpack.c.h.b16 %v1430
  %v1665 = vunpack.c.l.b16 %v1431
  %v1666 = vunpack.c.h.b16 %v1431
  %v1667 = vunpack.c.l.b16 %v1432
  %v1668 = vunpack.c.h.b16 %v1432
  %v1669 = vunpack.c.l.b16 %v1433
  %v1670 = vunpack.c.h.b16 %v1433
  %v1671 = vunpack.c.l.b16 %v1434
  %v1672 = vunpack.c.h.b16 %v1434
  %v1673 = vunpack.c.l.b16 %v1435
  %v1674 = vunpack.c.h.b16 %v1435
  %v1675 = vunpack.c.l.b16 %v1436
  %v1676 = vunpack.c.h.b16 %v1436
  %v1677 = vunpack.c.l.b16 %v1437
  %v1678 = vunpack.c.h.b16 %v1437
  %v1679 = vunpack.c.l.b16 %v1438
  %v1680 = vunpack.c.h.b16 %v1438
  %v1681 = vunpack.c.l.b16 %v1439
  %v1682 = vunpack.c.h.b16 %v1439
  %v1683 = vunpack.c.l.b16 %v1440
  %v1684 = vunpack.c.h.b16 %v1440
  %v1685 = vunpack.c.l.b16 %v1441
  %v1686 = vunpack.c.h.b16 %v1441
  %v1687 = vunpack.c.l.b16 %v1442
  %v1688 = vunpack.c.h.b16 %v1442
  %v1689 = vunpack.c.l.b16 %v1443
  %v1690 = vunpack.c.h.b16 %v1443
  %v1691 = vunpack.c.l.b16 %v1444
  %v1692 = vunpack.c.h.b16 %v1444
  %v1693 = vunpack.c.l.b16 %v1445
  %v1694 = vunpack.c.h.b16 %v1445
  %v1695 = vunpack.c.l.b16 %v1446
  %v1696 = vunpack.c.h.b16 %v1446
  %v1697 = vunpack.c.l.b16 %v1447
  %v1698 = vunpack.c.h.b16 %v1447
  %v1699 = vunpack.c.l.b16 %v1448
  %v1700 = vunpack.c.h.b16 %v1448
  %v1701 = vunpack.c.l.b16 %v1449
  %v1702 = vunpack.c.h.b16 %v1449
  %v1703 = vunpack.c.l.b16 %v1450
  %v1704 = vunpack.c.h.b16 %v1450
  %v1705 = vunpack.c.l.b16 %v1451
  %v1706 = vunpack.c.h.b16 %v1451
  %v1707 = vunpack.c.l.b16 %v1452
  %v1708 = vunpack.c.h.b16 %v1452
  %v1709 = vunpack.c.l.b16 %v1453
  %v1710 = vunpack.c.h.b16 %v1453
  %v1711 = vunpack.c.l.b16 %v1454
  %v1712 = vunpack.c.h.b16 %v1454
  %v1713 = vunpack.c.l.b16 %v1455
  %v1714 = vunpack.c.h.b16 %v1455
  %v1715 = vunpack.c.l.b16 %v1456
  %v1716 = vunpack.c.h.b16 %v1456
  %v1717 = vunpack.c.l.b16 %v1457
  %v1718 = vunpack.c.h.b16 %v1457
  %v1719 = vunpack.c.l.b16 %v1458
  %v1720 = vunpack.c.h.b16 %v1458
  %v1721 = vunpack.c.l.b16 %v1459
  %v1722 = vunpack.c.h.b16 %v1459
  %v1723 = vunpack.c.l.b16 %v1460
  %v1724 = vunpack.c.h.b16 %v1460
  %v1725 = vunpack.c.l.b16 %v1461
  %v1726 = vunpack.c.h.b16 %v1461
  %v1727 = vunpack.c.l.b16 %v1462
  %v1728 = vunpack.c.h.b16 %v1462
  %v1729 = vunpack.c.l.b16 %v1463
  %v1730 = vunpack.c.h.b16 %v1463
  %v1731 = vunpack.c.l.b16 %v1464
  %v1732 = vunpack.c.h.b16 %v1464
  %v1733 = vunpack.c.l.b16 %v1465
  %v1734 = vunpack.c.h.b16 %v1465
  %v1735 = vunpack.c.l.b16 %v1466
  %v1736 = vunpack.c.h.b16 %v1466
  %v1737 = vunpack.c.l.b16 %v1467
  %v1738 = vunpack.c.h.b16 %v1467
  %v1739 = vunpack.c.l.b16 %v1468
  %v1740 = vunpack.c.h.b16 %v1468
  %v1741 = vunpack.c.l.b16 %v1469
  %v1742 = vunpack.c.h.b16 %v1469
  %v1743 = vunpack.c.l.b16 %v1470
  %v1744 = vunpack.c.h.b16 %v1470
  %v1745 = vunpack.c.l.b16 %v1471
  %v1746 = vunpack.c.h.b16 %v1471
  %v1747 = vunpack.c.l.b16 %v1472
  %v1748 = vunpack.c.h.b16 %v1472
  %v1749 = vunpack.c.l.b16 %v1473
  %v1750 = vunpack.c.h.b16 %v1473
  %v1751 = vunpack.c.l.b16 %v1474
  %v1752 = vunpack.c.h.b16 %v1474
  %v1753 = vunpack.c.l.b16 %v1475
  %v1754 = vunpack.c.h.b16 %v1475
  %v1755 = vunpack.c.l.b16 %v1476
  %v1756 = vunpack.c.h.b16 %v1476
  %v1757 = vunpack.c.l.b16 %v1477
  %v1758 = vunpack.c.h.b16 %v1477
  %v1759 = vunpack.c.l.b16 %v1478
  %v1760 = vunpack.c.h.b16 %v1478
  %v1761 = vunpack.c.l.b16 %v1479
  %v1762 = vunpack.c.h.b16 %v1479
  %v1763 = vunpack.c.l.b16 %v1480
  %v1764 = vunpack.c.h.b16 %v1480
  %v1765 = vunpack.c.l.b16 %v1481
  %v1766 = vunpack.c.h.b16 %v1481
  %v1767 = vunpack.c.l.b16 %v1482
  %v1768 = vunpack.c.h.b16 %v1482
  %v1769 = vunpack.c.l.b16 %v1483
  %v1770 = vunpack.c.h.b16 %v1483
  %v1771 = vunpack.c.l.b16 %v1484
  %v1772 = vunpack.c.h.b16 %v1484
  %v1773 = vunpack.c.l.b16 %v1485
  %v1774 = vunpack.c.h.b16 %v1485
  %v1775 = vunpack.c.l.b16 %v1486
  %v1776 = vunpack.c.h.b16 %v1486
  %v1777 = vunpack.c.l.b16 %v1487
  %v1778 = vunpack.c.h.b16 %v1487
  %v1779 = vunpack.c.l.b16 %v1488
  %v1780 = vunpack.c.h.b16 %v1488
  %v1781 = vunpack.c.l.b16 %v1489
  %v1782 = vunpack.c.h.b16 %v1489
  %v1783 = vunpack.c.l.b16 %v1490
  %v1784 = vunpack.c.h.b16 %v1490
  %v1785 = vunpack.c.l.b16 %v1491
  %v1786 = vunpack.c.h.b16 %v1491
  %v1787 = vunpack.c.l.b16 %v1492
  %v1788 = vunpack.c.h.b16 %v1492
  %v1789 = vunpack.c.l.b16 %v1493
  %v1790 = vunpack.c.h.b16 %v1493
  %v1791 = vunpack.c.l.b16 %v1494
  %v1792 = vunpack.c.h.b16 %v1494
  %v1793 = vunpack.c.l.b16 %v1495
  %v1794 = vunpack.c.h.b16 %v1495
  %v1795 = vunpack.c.l.b16 %v1496
  %v1796 = vunpack.c.h.b16 %v1496
  %v1797 = vpack.c.b16 %v1607, %v1605
  %v1798 = vpack.c.b16 %v1608, %v1606
  %v1799 = vpack.c.b16 %v1611, %v1609
  %v1800 = vpack.c.b16 %v1612, %v1610
  %v1801 = vpack.c.b16 %v1615, %v1613
  %v1802 = vpack.c.b16 %v1616, %v1614
  %v1803 = vpack.c.b16 %v1619, %v1617
  %v1804 = vpack.c.b16 %v1620, %v1618
  %v1805 = vpack.c.b16 %v1623, %v1621
  %v1806 = vpack.c.b16 %v1624, %v1622
  %v1807 = vpack.c.b16 %v1627, %v1625
  %v1808 = vpack.c.b16 %v1628, %v1626
  %v1809 = vpack.c.b16 %v1631, %v1629
  %v1810 = vpack.c.b16 %v1632, %v1630
  %v1811 = vpack.c.b16 %v1635, %v1633
  %v1812 = vpack.c.b16 %v1636, %v1634
  %v1813 = vpack.c.b16 %v1639, %v1637
  %v1814 = vpack.c.b16 %v1640, %v1638
  %v1815 = vpack.c.b16 %v1643, %v1641
  %v1816 = vpack.c.b16 %v1644, %v1642
  %v1817 = vpack.c.b16 %v1647, %v1645
  %v1818 = vpack.c.b16 %v1648, %v1646
  %v1819 = vpack.c.b16 %v1651, %v1649
  %v1820 = vpack.c.b16 %v1652, %v1650
  %v1821 = vpack.c.b16 %v1655, %v1653
  %v1822 = vpack.c.b16 %v1656, %v1654
  %v1823 = vpack.c.b16 %v1659, %v1657
  %v1824 = vpack.c.b16 %v1660, %v1658
  %v1825 = vpack.c.b16 %v1663, %v1661
  %v1826 = vpack.c.b16 %v1664, %v1662
  %v1827 = vpack.c.b16 %v1667, %v1665
  %v1828 = vpack.c.b16 %v1668, %v1666
  %v1829 = vpack.c.b16 %v1671, %v1669
  %v1830 = vpack.c.b16 %v1672, %v1670
  %v1831 = vpack.c.b16 %v1675, %v1673
  %v1832 = vpack.c.b16 %v1676, %v1674
  %v1833 = vpack.c.b16 %v1679, %v1677
  %v1834 = vpack.c.b16 %v1680, %v1678
  %v1835 = vpack.c.b16 %v1683, %v1681
  %v1836 = vpack.c.b16 %v1684, %v1682
  %v1837 = vpack.c.b16 %v1687, %v1685
  %v1838 = vpack.c.b16 %v1688, %v1686
  %v1839 = vpack.c.b16 %v1691, %v1689
  %v1840 = vpack.c.b16 %v1692, %v1690
  %v1841 = vpack.c.b16 %v1695, %v1693
  %v1842 = vpack.c.b16 %v1696, %v1694
  %v1843 = vpack.c.b16 %v1699, %v1697
  %v1844 = vpack.c.b16 %v1700, %v1698
  %v1845 = vpack.c.b16 %v1703, %v1701
  %v1846 = vpack.c.b16 %v1704, %v1702
  %v1847 = vpack.c.b16 %v1707, %v1705
  %v1848 = vpack.c.b16 %v1708, %v1706
  %v1849 = vpack.c.b16 %v1711, %v1709
  %v1850 = vpack.c.b16 %v1712, %v1710
  %v1851 = vpack.c.b16 %v1715, %v1713
  %v1852 = vpack.c.b16 %v1716, %v1714
  %v1853 = vpack.c.b16 %v1719, %v1717
  %v1854 = vpack.c.b16 %v1720, %v1718
  %v1855 = vpack.c.b16 %v1723, %v1721
  %v1856 = vpack.c.b16 %v1724, %v1722
  %v1857 = vpack.c.b16 %v1727, %v1725
  %v1858 = vpack.c.b16 %v1728, %v1726
  %v1859 = vpack.c.b16 %v1731, %v1729
  %v1860 = vpack.c.b16 %v1732, %v1730
  %v1861 = vpack.c.b16 %v1735, %v1733
  %v1862 = vpack.c.b16 %v1736, %v1734
  %v1863 = vpack.c.b16 %v1739, %v1737
  %v1864 = vpack.c.b16 %v1740, %v1738
  %v1865 = vpack.c.b16 %v1743, %v1741
  %v1866 = vpack.c.b16 %v1744, %v1742
  %v1867 = vpack.c.b16 %v1747, %v1745
  %v1868 = vpack.c.b16 %v1748, %v1746
  %v1869 = vpack.c.b16 %v1751, %v1749
  %v1870 = vpack.c.b16 %v1752, %v1750
  %v1871 = vpack.c.b16 %v1755, %v1753
  %v1872 = vpack.c.b16 %v1756, %v1754
  %v1873 = vpack.c.b16 %v1759, %v1757
  %v1874 = vpack.c.b16 %v1760, %v1758
  %v1875 = vpack.c.b16 %v1763, %v1761
  %v1876 = vpack.c.b16 %v1764, %v1762
  %v1877 = vpack.c.b16 %v1767, %v1765
  %v1878 = vpack.c.b16 %v1768, %v1766
  %v1879 = vpack.c.b16 %v1771, %v1769
  %v1880 = vpack.c.b16 %v1772, %v1770
  %v1881 = vpack.c.b16 %v1775, %v1773
  %v1882 = vpack.c.b16 %v1776, %v1774
  %v1883 = vpack.c.b16 %v1779, %v1777
  %v1884 = vpack.c.b16 %v1780, %v1778
  %v1885 = vpack.c.b16 %v1783, %v1781
  %v1886 = vpack.c.b16 %v1784, %v1782
  %v1887 = vpack.c.b16 %v1787, %v1785
  %v1888 = vpack.c.b16 %v1788, %v1786
  %v1889 = vpack.c.b16 %v1791, %v1789
  %v1890 = vpack.c.b16 %v1792, %v1790
  %v1891 = vpack.c.b16 %v1795, %v1793
  %v1892 = vpack.c.b16 %v1796, %v1794
  %1989 = vmatprep.subr.bf16.mxu0 %v1798
  %1990 = vmatpush1.bf16.msra.mxu0 %v1797
  %1991 = vmatprep.subr.bf16.mxu0 %v1800
  %1992 = vmatpush1.bf16.msra.mxu0 %v1799
  %1993 = vmatprep.subr.bf16.mxu0 %v1802
  %1994 = vmatpush1.bf16.msra.mxu0 %v1801
  %1995 = vmatprep.subr.bf16.mxu0 %v1804
  %1996 = vmatpush1.bf16.msra.mxu0 %v1803
  %1997 = vmatprep.subr.bf16.mxu0 %v1806
  %1998 = vmatpush1.bf16.msra.mxu0 %v1805
  %1999 = vmatprep.subr.bf16.mxu0 %v1808
  %2000 = vmatpush1.bf16.msra.mxu0 %v1807
  %2001 = vmatprep.subr.bf16.mxu0 %v1810
  %2002 = vmatpush1.bf16.msra.mxu0 %v1809
  %2003 = vmatprep.subr.bf16.mxu0 %v1812
  %2004 = vmatpush1.bf16.msra.mxu0 %v1811
  %2005 = vmatprep.subr.bf16.mxu0 %v1814
  %2006 = vmatpush1.bf16.msra.mxu0 %v1813
  %2007 = vmatprep.subr.bf16.mxu0 %v1816
  %2008 = vmatpush1.bf16.msra.mxu0 %v1815
  %2009 = vmatprep.subr.bf16.mxu0 %v1818
  %2010 = vmatpush1.bf16.msra.mxu0 %v1817
  %2011 = vmatprep.subr.bf16.mxu0 %v1820
  %2012 = vmatpush1.bf16.msra.mxu0 %v1819
  %2013 = vmatprep.subr.bf16.mxu0 %v1822
  %2014 = vmatpush1.bf16.msra.mxu0 %v1821
  %2015 = vmatprep.subr.bf16.mxu0 %v1824
  %2016 = vmatpush1.bf16.msra.mxu0 %v1823
  %2017 = vmatprep.subr.bf16.mxu0 %v1826
  %2018 = vmatpush1.bf16.msra.mxu0 %v1825
  %2019 = vmatprep.subr.bf16.mxu0 %v1828
  %2020 = vmatpush1.bf16.msra.mxu0 %v1827
  %2021 = vmatprep.mubr.bf16.mxu0 %v1396
  %2022 = vmatmul.mubr.bf16.gmra.mrb[0].mxu0 %v1395
  %v2023 = vpop.f32.mrb[0].mxu0
  %v2024 = vadd.f32 %v1502, %v2023
  %v2025 = vpop.f32.mrb[0].mxu0
  %v2026 = vadd.f32 %v1506, %v2025
  %v2027 = vpop.f32.mrb[0].mxu0
  %v2028 = vadd.f32 %v1502, %v2027
  %v2029 = vpop.f32.mrb[0].mxu0
  %v2030 = vadd.f32 %v1506, %v2029
  %2031 = vdwg.mxu0
  %2032 = vmatprep.subr.bf16.mxu0 %v1830
  %2033 = vmatpush1.bf16.msra.mxu0 %v1829
  %2034 = vmatprep.subr.bf16.mxu0 %v1832
  %2035 = vmatpush1.bf16.msra.mxu0 %v1831
  %2036 = vmatprep.subr.bf16.mxu0 %v1834
  %2037 = vmatpush1.bf16.msra.mxu0 %v1833
  %2038 = vmatprep.subr.bf16.mxu0 %v1836
  %2039 = vmatpush1.bf16.msra.mxu0 %v1835
  %2040 = vmatprep.subr.bf16.mxu0 %v1838
  %2041 = vmatpush1.bf16.msra.mxu0 %v1837
  %2042 = vmatprep.subr.bf16.mxu0 %v1840
  %2043 = vmatpush1.bf16.msra.mxu0 %v1839
  %2044 = vmatprep.subr.bf16.mxu0 %v1842
  %2045 = vmatpush1.bf16.msra.mxu0 %v1841
  %2046 = vmatprep.subr.bf16.mxu0 %v1844
  %2047 = vmatpush1.bf16.msra.mxu0 %v1843
  %2048 = vmatprep.subr.bf16.mxu0 %v1846
  %2049 = vmatpush1.bf16.msra.mxu0 %v1845
  %2050 = vmatprep.subr.bf16.mxu0 %v1848
  %2051 = vmatpush1.bf16.msra.mxu0 %v1847
  %2052 = vmatprep.subr.bf16.mxu0 %v1850
  %2053 = vmatpush1.bf16.msra.mxu0 %v1849
  %2054 = vmatprep.subr.bf16.mxu0 %v1852
  %2055 = vmatpush1.bf16.msra.mxu0 %v1851
  %2056 = vmatprep.subr.bf16.mxu0 %v1854
  %2057 = vmatpush1.bf16.msra.mxu0 %v1853
  %2058 = vmatprep.subr.bf16.mxu0 %v1856
  %2059 = vmatpush1.bf16.msra.mxu0 %v1855
  %2060 = vmatprep.subr.bf16.mxu0 %v1858
  %2061 = vmatpush1.bf16.msra.mxu0 %v1857
  %2062 = vmatprep.subr.bf16.mxu0 %v1860
  %2063 = vmatpush1.bf16.msra.mxu0 %v1859
  %2064 = vmatprep.mubr.bf16.mxu0 %v1398
  %2065 = vmatmul.mubr.bf16.gmra.mrb[0].mxu0 %v1397
  %v2066 = vpop.f32.mrb[0].mxu0
  %v2067 = vadd.f32 %v2024, %v2066
  %v2068 = vpop.f32.mrb[0].mxu0
  %v2069 = vadd.f32 %v2026, %v2068
  %v2070 = vpop.f32.mrb[0].mxu0
  %v2071 = vadd.f32 %v2028, %v2070
  %v2072 = vpop.f32.mrb[0].mxu0
  %v2073 = vadd.f32 %v2030, %v2072
  %2074 = vdwg.mxu0
  %2075 = vmatprep.subr.bf16.mxu0 %v1862
  %2076 = vmatpush1.bf16.msra.mxu0 %v1861
  %2077 = vmatprep.subr.bf16.mxu0 %v1864
  %2078 = vmatpush1.bf16.msra.mxu0 %v1863
  %2079 = vmatprep.subr.bf16.mxu0 %v1866
  %2080 = vmatpush1.bf16.msra.mxu0 %v1865
  %2081 = vmatprep.subr.bf16.mxu0 %v1868
  %2082 = vmatpush1.bf16.msra.mxu0 %v1867
  %2083 = vmatprep.subr.bf16.mxu0 %v1870
  %2084 = vmatpush1.bf16.msra.mxu0 %v1869
  %2085 = vmatprep.subr.bf16.mxu0 %v1872
  %2086 = vmatpush1.bf16.msra.mxu0 %v1871
  %2087 = vmatprep.subr.bf16.mxu0 %v1874
  %2088 = vmatpush1.bf16.msra.mxu0 %v1873
  %2089 = vmatprep.subr.bf16.mxu0 %v1876
  %2090 = vmatpush1.bf16.msra.mxu0 %v1875
  %2091 = vmatprep.subr.bf16.mxu0 %v1878
  %2092 = vmatpush1.bf16.msra.mxu0 %v1877
  %2093 = vmatprep.subr.bf16.mxu0 %v1880
  %2094 = vmatpush1.bf16.msra.mxu0 %v1879
  %2095 = vmatprep.subr.bf16.mxu0 %v1882
  %2096 = vmatpush1.bf16.msra.mxu0 %v1881
  %2097 = vmatprep.subr.bf16.mxu0 %v1884
  %2098 = vmatpush1.bf16.msra.mxu0 %v1883
  %2099 = vmatprep.subr.bf16.mxu0 %v1886
  %2100 = vmatpush1.bf16.msra.mxu0 %v1885
  %2101 = vmatprep.subr.bf16.mxu0 %v1888
  %2102 = vmatpush1.bf16.msra.mxu0 %v1887
  %2103 = vmatprep.subr.bf16.mxu0 %v1890
  %2104 = vmatpush1.bf16.msra.mxu0 %v1889
  %2105 = vmatprep.subr.bf16.mxu0 %v1892
  %2106 = vmatpush1.bf16.msra.mxu0 %v1891
  %2107 = vmatprep.mubr.bf16.mxu0 %v1400
  %2108 = vmatmul.mubr.bf16.gmra.mrb[0].mxu0 %v1399
  %v2109 = vpop.f32.mrb[0].mxu0
  %v2110 = vadd.f32 %v2067, %v2109
  %v2111 = vpop.f32.mrb[0].mxu0
  %v2112 = vadd.f32 %v2069, %v2111
  %v2113 = vpop.f32.mrb[0].mxu0
  %v2114 = vadd.f32 %v2071, %v2113
  %v2115 = vpop.f32.mrb[0].mxu0
  %v2116 = vadd.f32 %v2073, %v2115
  %2117 = vdwg.mxu0
  %vm2118 = vcmp.gt.f32.partialorder %v2110, 0.0
  %vm2119 = vcmp.gt.f32.partialorder %v2112, 0.0
  %vm2120 = vcmp.gt.f32.partialorder %v2114, 0.0
  %vm2121 = vcmp.gt.f32.partialorder %v2116, 0.0
  %v2122 = vmul.f32 %v2110, 0.01
  %v2123 = vmul.f32 %v2112, 0.01
  %v2124 = vmul.f32 %v2114, 0.01
  %v2125 = vmul.f32 %v2116, 0.01
  %v2126 = vsel %vm2118, %v2110, %v2122
  %v2127 = vsel %vm2119, %v2112, %v2123
  %v2128 = vsel %vm2120, %v2114, %v2124
  %v2129 = vsel %vm2121, %v2116, %v2125
  %v2130 = vpack.c.bf16 %v2128, %v2126
  %v2131 = vpack.c.bf16 %v2129, %v2127
  %v2132 = vld [vmem:[%s8] sm:$0xf]
  %v2133 = vld [vmem:[%s8 + $0x4] sm:$0xf]
  %v2134 = vld [vmem:[%s8 + $0x8] sm:$0xf]
  %v2135 = vld [vmem:[%s8 + $0xc] sm:$0xf]
  %v2136 = vld [vmem:[%s8 + $0x10] sm:$0xf]
  %v2137 = vld [vmem:[%s8 + $0x14] sm:$0xf]
  %v2138 = vld [vmem:[%s8 + $0x18] sm:$0xf]
  %v2139 = vld [vmem:[%s8 + $0x1c] sm:$0xf]
  %v2140 = vld [vmem:[%s8 + $0x20] sm:$0xf]
  %v2141 = vld [vmem:[%s8 + $0x24] sm:$0xf]
  %v2142 = vld [vmem:[%s8 + $0x28] sm:$0xf]
  %v2143 = vld [vmem:[%s8 + $0x2c] sm:$0xf]
  %v2144 = vld [vmem:[%s8 + $0x30] sm:$0xf]
  %v2145 = vld [vmem:[%s8 + $0x34] sm:$0xf]
  %v2146 = vld [vmem:[%s8 + $0x38] sm:$0xf]
  %v2147 = vld [vmem:[%s8 + $0x3c] sm:$0xf]
  %v2148 = vld [vmem:[%s8 + $0x40] sm:$0xf]
  %v2149 = vld [vmem:[%s8 + $0x44] sm:$0xf]
  %v2150 = vld [vmem:[%s8 + $0x48] sm:$0xf]
  %v2151 = vld [vmem:[%s8 + $0x4c] sm:$0xf]
  %v2152 = vld [vmem:[%s8 + $0x50] sm:$0xf]
  %v2153 = vld [vmem:[%s8 + $0x54] sm:$0xf]
  %v2154 = vld [vmem:[%s8 + $0x58] sm:$0xf]
  %v2155 = vld [vmem:[%s8 + $0x5c] sm:$0xf]
  %v2156 = vld [vmem:[%s8 + $0x60] sm:$0xf]
  %v2157 = vld [vmem:[%s8 + $0x64] sm:$0xf]
  %v2158 = vld [vmem:[%s8 + $0x68] sm:$0xf]
  %v2159 = vld [vmem:[%s8 + $0x6c] sm:$0xf]
  %v2160 = vld [vmem:[%s8 + $0x70] sm:$0xf]
  %v2161 = vld [vmem:[%s8 + $0x74] sm:$0xf]
  %v2162 = vld [vmem:[%s8 + $0x78] sm:$0xf]
  %v2163 = vld [vmem:[%s8 + $0x7c] sm:$0xf]
  %v2164 = vld [vmem:[%s9] sm:$0x1]
  %v2166 = vlaneseq
  %v2167 = vshrl.u32 %v2166, 7
  %v2168 = vsub.s32 0, %v2167
  %v2169 = vrot.slane %v2164, %v2168
  %v2203 = vunpack.c.l.b16 %v2132
  %v2204 = vunpack.c.l.b16 %v2133
  %v2205 = vunpack.c.l.b16 %v2134
  %v2206 = vunpack.c.l.b16 %v2135
  %v2207 = vunpack.c.l.b16 %v2136
  %v2208 = vunpack.c.l.b16 %v2137
  %v2209 = vunpack.c.l.b16 %v2138
  %v2210 = vunpack.c.l.b16 %v2139
  %v2211 = vunpack.c.l.b16 %v2140
  %v2212 = vunpack.c.l.b16 %v2141
  %v2213 = vunpack.c.l.b16 %v2142
  %v2214 = vunpack.c.l.b16 %v2143
  %v2215 = vunpack.c.l.b16 %v2144
  %v2216 = vunpack.c.l.b16 %v2145
  %v2217 = vunpack.c.l.b16 %v2146
  %v2218 = vunpack.c.l.b16 %v2147
  %v2219 = vunpack.c.l.b16 %v2148
  %v2220 = vunpack.c.l.b16 %v2149
  %v2221 = vunpack.c.l.b16 %v2150
  %v2222 = vunpack.c.l.b16 %v2151
  %v2223 = vunpack.c.l.b16 %v2152
  %v2224 = vunpack.c.l.b16 %v2153
  %v2225 = vunpack.c.l.b16 %v2154
  %v2226 = vunpack.c.l.b16 %v2155
  %v2227 = vunpack.c.l.b16 %v2156
  %v2228 = vunpack.c.l.b16 %v2157
  %v2229 = vunpack.c.l.b16 %v2158
  %v2230 = vunpack.c.l.b16 %v2159
  %v2231 = vunpack.c.l.b16 %v2160
  %v2232 = vunpack.c.l.b16 %v2161
  %v2233 = vunpack.c.l.b16 %v2162
  %v2234 = vunpack.c.l.b16 %v2163
  %v2235 = vpack.c.b16 %v2204, %v2203
  %v2236 = vpack.c.b16 %v2206, %v2205
  %v2237 = vpack.c.b16 %v2208, %v2207
  %v2238 = vpack.c.b16 %v2210, %v2209
  %v2239 = vpack.c.b16 %v2212, %v2211
  %v2240 = vpack.c.b16 %v2214, %v2213
  %v2241 = vpack.c.b16 %v2216, %v2215
  %v2242 = vpack.c.b16 %v2218, %v2217
  %v2243 = vpack.c.b16 %v2220, %v2219
  %v2244 = vpack.c.b16 %v2222, %v2221
  %v2245 = vpack.c.b16 %v2224, %v2223
  %v2246 = vpack.c.b16 %v2226, %v2225
  %v2247 = vpack.c.b16 %v2228, %v2227
  %v2248 = vpack.c.b16 %v2230, %v2229
  %v2249 = vpack.c.b16 %v2232, %v2231
  %v2250 = vpack.c.b16 %v2234, %v2233
  %2267 = vmatprep.subr.bf16.mxu0 0
  %2268 = vmatpush1.bf16.msra.mxu0 %v2235
  %2269 = vmatprep.subr.bf16.mxu0 0
  %2270 = vmatpush1.bf16.msra.mxu0 %v2236
  %2271 = vmatprep.subr.bf16.mxu0 0
  %2272 = vmatpush1.bf16.msra.mxu0 %v2237
  %2273 = vmatprep.subr.bf16.mxu0 0
  %2274 = vmatpush1.bf16.msra.mxu0 %v2238
  %2275 = vmatprep.subr.bf16.mxu0 0
  %2276 = vmatpush1.bf16.msra.mxu0 %v2239
  %2277 = vmatprep.subr.bf16.mxu0 0
  %2278 = vmatpush1.bf16.msra.mxu0 %v2240
  %2279 = vmatprep.subr.bf16.mxu0 0
  %2280 = vmatpush1.bf16.msra.mxu0 %v2241
  %2281 = vmatprep.subr.bf16.mxu0 0
  %2282 = vmatpush1.bf16.msra.mxu0 %v2242
  %2283 = vmatprep.subr.bf16.mxu0 0
  %2284 = vmatpush1.bf16.msra.mxu0 %v2243
  %2285 = vmatprep.subr.bf16.mxu0 0
  %2286 = vmatpush1.bf16.msra.mxu0 %v2244
  %2287 = vmatprep.subr.bf16.mxu0 0
  %2288 = vmatpush1.bf16.msra.mxu0 %v2245
  %2289 = vmatprep.subr.bf16.mxu0 0
  %2290 = vmatpush1.bf16.msra.mxu0 %v2246
  %2291 = vmatprep.subr.bf16.mxu0 0
  %2292 = vmatpush1.bf16.msra.mxu0 %v2247
  %2293 = vmatprep.subr.bf16.mxu0 0
  %2294 = vmatpush1.bf16.msra.mxu0 %v2248
  %2295 = vmatprep.subr.bf16.mxu0 0
  %2296 = vmatpush1.bf16.msra.mxu0 %v2249
  %2297 = vmatprep.subr.bf16.mxu0 0
  %2298 = vmatpush1.bf16.msra.mxu0 %v2250
  %2299 = vmatprep.mubr.bf16.mxu0 %v2131
  %2300 = vmatmul.mubr.bf16.gmra.mrb[0].mxu0 %v2130
  %v2301 = vpop.f32.mrb[0].mxu0
  %v2302 = vadd.f32 %v2169, %v2301
  %v2303 = vpop.f32.mrb[0].mxu0
  %v2304 = vpop.f32.mrb[0].mxu0
  %v2305 = vadd.f32 %v2169, %v2304
  %v2306 = vpop.f32.mrb[0].mxu0
  %2307 = vdwg.mxu0
  %2308 = vmax.xlane.f32.xlu0 %v2302
  %v2309 = vpop.xlane.xlu0 %2308
  %2310 = vmax.xlane.f32.xlu0 %v2305
  %v2311 = vpop.xlane.xlu0 %2310
  %v2312 = vsub.f32 %v2302, %v2309
  %v2313 = vsub.f32 %v2305, %v2311
  %v2314 = vmul.f32 %v2312, 1.442695
  %v2315 = vpow.pop %v2314
  %v2316 = vmul.f32 %v2313, 1.442695
  %v2317 = vpow.pop %v2316
  %2318 = vadd.xlane.f32.xlu0 %v2315
  %v2319 = vpop.xlane.xlu0 %2318
  %2320 = vadd.xlane.f32.xlu0 %v2317
  %v2321 = vpop.xlane.xlu0 %2320
  %v2322 = vrcp.pop %v2319
  %v2323 = vrcp.pop %v2321
  %v2324 = vmul.f32 %v2315, %v2322
  %v2325 = vmul.f32 %v2317, %v2323
  %2326 = vst [vmem:[%s10] sm:$0xff] %v2324
  %2327 = vst [vmem:[%s10 + $0x8] sm:$0xff] %v2325
  // Predicated region
  $region42: #{cnn_forward.1} parent=0 // pred_check
    _
  $region43: #{cnn_forward.1} parent=0 // pred_check_branch
    %2329 = sbr.rel (0) target = $region45
  $region44: #{cnn_forward.1} parent=0 // pred_region
    _
  $region45: #{cnn_forward.1} parent=0 // pred_fallthru
    _
  // Predicated region
  $region46: #{cnn_forward.1} parent=0 // pred_check
    _
  $region47: #{cnn_forward.1} parent=0 // pred_check_branch
    %2331 = sbr.rel (0) target = $region49
  $region48: #{cnn_forward.1} parent=0 // pred_region
    _
  $region49: #{cnn_forward.1} parent=0 // pred_fallthru
    _

</llo_original>
